<compile_context>
chip_gen: v6e
topology: v6e:2x2x1
jax: 0.10.0
libtpu: 0.0.40
codegen_flags: <defaults>
</compile_context>

<pallas_src>
import functools

import jax
import jax.numpy as jnp
from jax import lax
from jax.experimental import pallas as pl
from jax.experimental.pallas import tpu as pltpu


def _round_up(x, m):
    return ((x + m - 1) // m) * m


def _pick_tile(dim, cap, align):
    """Largest tile <= cap that divides `dim` and is a multiple of `align`;
    falls back to the full dim (a full-extent block is always legal)."""
    if dim <= cap:
        return dim
    t = (cap // align) * align
    while t >= align:
        if dim % t == 0:
            return t
        t -= align
    return dim


# --------------------------- linear (matmul + bias) --------------------------

def linear_kernel(x_ref, w_ref, b_ref, o_ref, acc_ref):
    # grid = (M/tm, N/tn, K/tk); K axis last ("arbitrary"), f32 accumulator.
    @pl.when(pl.program_id(2) == 0)
    def _():
        acc_ref[...] = jnp.zeros_like(acc_ref)

    acc_ref[...] += jnp.dot(x_ref[...], w_ref[...],
                            preferred_element_type=jnp.float32)

    @pl.when(pl.program_id(2) == pl.num_programs(2) - 1)
    def _():
        o_ref[...] = (acc_ref[...] + b_ref[...]).astype(o_ref.dtype)


def linear(x2d, w, b, *, tm_cap=512, tn_cap=512, tk_cap=512):
    """y = x2d @ w + b. 512-sized bf16 blocks keep double-buffered VMEM use at
    a few MiB (safe for v7x's 64 MiB physical VMEM) while hitting the large-tile
    HBM-roofline regime on v5e/v6e."""
    M, K = x2d.shape
    Kw, N = w.shape
    assert Kw == K
    tm = _pick_tile(M, tm_cap, 8)
    tn = _pick_tile(N, tn_cap, 128)
    tk = _pick_tile(K, tk_cap, 128)
    grid = (M // tm, N // tn, K // tk)
    return pl.pallas_call(
        linear_kernel,
        out_shape=jax.ShapeDtypeStruct((M, N), x2d.dtype),
        grid=grid,
        in_specs=[
            pl.BlockSpec((tm, tk), lambda i, j, k: (i, k)),
            pl.BlockSpec((tk, tn), lambda i, j, k: (k, j)),
            pl.BlockSpec((1, tn), lambda i, j, k: (0, j)),
        ],
        out_specs=pl.BlockSpec((tm, tn), lambda i, j, k: (i, j)),
        scratch_shapes=[pltpu.VMEM((tm, tn), jnp.float32)],
        compiler_params=pltpu.CompilerParams(
            dimension_semantics=("parallel", "parallel", "arbitrary"),
            vmem_limit_bytes=48 * 1024 * 1024),
    )(x2d, w, b.reshape(1, N))


# --------------------- fused attention + output projection -------------------

def attn_kernel(q_ref, k_ref, v_ref, wp_ref, bp_ref, o_ref,
                m_sc, l_sc, acc_sc, *, num_heads, n_valid, n_padded):
    """One (batch, q-block, kv-block) grid step.

    q_ref: (tq, C) queries (softmax scale already folded into the qkv weights);
    k_ref / v_ref: (tkv, C) keys/values for this KV block;
    wp_ref: (C, C), bp_ref: (1, C) resident projection weights;
    o_ref: (tq, C) projected output, written only on the last KV step.
    """
    tq, C = q_ref.shape
    tkv = k_ref.shape[0]
    hd = C // num_heads
    ki = pl.program_id(2)

    @pl.when(ki == 0)
    def _():
        m_sc[...] = jnp.full(m_sc.shape, -jnp.inf, dtype=m_sc.dtype)
        l_sc[...] = jnp.zeros(l_sc.shape, dtype=l_sc.dtype)
        acc_sc[...] = jnp.zeros(acc_sc.shape, dtype=acc_sc.dtype)

    # Head split in VMEM: build (nh, tokens, hd) from lane slices of the fused
    # qkv block. (Kept as slice+stack -- the same relayout a reshape+transpose
    # would produce -- because Mosaic lowers static lane slices / leading-axis
    # concat reliably; minormost-dim reshapes + non-minor transposes are not
    # guaranteed. The per-head *store* problem is gone: see epilogue.)
    q = jnp.stack([q_ref[:, h * hd:(h + 1) * hd] for h in range(num_heads)], axis=0)
    k = jnp.stack([k_ref[:, h * hd:(h + 1) * hd] for h in range(num_heads)], axis=0)
    v = jnp.stack([v_ref[:, h * hd:(h + 1) * hd] for h in range(num_heads)], axis=0)

    # QK^T contracting the head dim of both operands (no K transpose); f32 acc.
    s = jnp.einsum("hqd,hkd->hqk", q, k,
                   preferred_element_type=jnp.float32)          # (nh, tq, tkv)

    if n_padded > n_valid:
        # Mask padded key positions. tkv is a multiple of 128 > (n_padded -
        # n_valid), so every KV block holds at least one real key and the
        # running max stays finite.
        key_pos = ki * tkv + lax.broadcasted_iota(jnp.int32, (1, 1, tkv), 2)
        s = jnp.where(key_pos < n_valid, s, -1e30)

    # Online (flash) softmax across KV blocks.
    m_prev = m_sc[...]
    m_new = jnp.maximum(m_prev, jnp.max(s, axis=-1, keepdims=True))
    alpha = jnp.exp(m_prev - m_new)
    p = jnp.exp(s - m_new)
    l_sc[...] = alpha * l_sc[...] + jnp.sum(p, axis=-1, keepdims=True)
    acc_sc[...] = alpha * acc_sc[...] + jnp.einsum(
        "hqk,hkd->hqd", p.astype(v.dtype), v,
        preferred_element_type=jnp.float32)
    m_sc[...] = m_new

    @pl.when(ki == pl.num_programs(2) - 1)
    def _():
        # Deferred normalization on the small (nh, tq, hd) accumulator;
        # approx reciprocal lowers to a single EUP vrcp.
        o = acc_sc[...] * pl.reciprocal(l_sc[...], approx=True)
        # Fused output projection with the head merge folded into the matmul:
        #   out = b_proj + sum_h o_h @ W_proj[h*hd:(h+1)*hd, :]
        # -> no (nh, tq, hd) -> (tq, C) relayout, no per-head partial stores,
        # and a single lane-dense full-width (tq, C) store.
        out = jnp.broadcast_to(bp_ref[...].astype(jnp.float32), (tq, C))
        for h in range(num_heads):
            out = out + jnp.dot(o[h].astype(wp_ref.dtype),
                                wp_ref[h * hd:(h + 1) * hd, :],
                                preferred_element_type=jnp.float32)
        o_ref[...] = out.astype(o_ref.dtype)


def mha_proj(qkv, w_proj, b_proj, *, B, n_valid, n_padded, C, num_heads,
             out_dtype, tq_cap=256, tkv_cap=512):
    """softmax((q*scale) k^T) v followed by the fused output projection.
    Reads q/k/v straight out of the fused (B*Np, 3C) qkv buffer via column
    offsets and writes the projected (B*Np, C) channels-last activation."""
    Np = n_padded
    assert Np % 128 == 0
    tq = _pick_tile(Np, tq_cap, 8)
    tkv = _pick_tile(Np, tkv_cap, 128)   # multiple of 128 -> padding < one block
    nq = Np // tq
    nkv = Np // tkv
    hd = C // num_heads

    if C % 128 == 0:
        # Slice q/k/v out of the fused buffer via lane-aligned column offsets
        # (no HBM-side split or transpose).
        q_in = k_in = v_in = qkv
        q_col, k_col, v_col = 0, 1, 2
    else:
        # Fallback for lane-unaligned C: materialize the three slices so each
        # block spans the full (always legal) width of its array.
        q_in, k_in, v_in = qkv[:, :C], qkv[:, C:2 * C], qkv[:, 2 * C:]
        q_col = k_col = v_col = 0

    kernel = functools.partial(attn_kernel, num_heads=num_heads,
                               n_valid=n_valid, n_padded=Np)
    return pl.pallas_call(
        kernel,
        out_shape=jax.ShapeDtypeStruct((B * Np, C), out_dtype),
        grid=(B, nq, nkv),
        in_specs=[
            pl.BlockSpec((tq, C),
                         lambda b, qi, ki, _n=nq, _c=q_col: (b * _n + qi, _c)),
            pl.BlockSpec((tkv, C),
                         lambda b, qi, ki, _n=nkv, _c=k_col: (b * _n + ki, _c)),
            pl.BlockSpec((tkv, C),
                         lambda b, qi, ki, _n=nkv, _c=v_col: (b * _n + ki, _c)),
            pl.BlockSpec((C, C), lambda b, qi, ki: (0, 0)),   # w_proj resident
            pl.BlockSpec((1, C), lambda b, qi, ki: (0, 0)),   # b_proj resident
        ],
        out_specs=pl.BlockSpec((tq, C),
                               lambda b, qi, ki, _n=nq: (b * _n + qi, 0)),
        scratch_shapes=[
            pltpu.VMEM((num_heads, tq, 1), jnp.float32),    # running max
            pltpu.VMEM((num_heads, tq, 1), jnp.float32),    # running sum
            pltpu.VMEM((num_heads, tq, hd), jnp.float32),   # output accumulator
        ],
        compiler_params=pltpu.CompilerParams(
            dimension_semantics=("parallel", "parallel", "arbitrary"),
            vmem_limit_bytes=48 * 1024 * 1024),
    )(q_in, k_in, v_in, w_proj, b_proj.reshape(1, C))


# ------------------------------ module wrapper -------------------------------

def attention_forward(x, params, num_heads, compute_dtype=jnp.bfloat16):
    """Equivalent of Attention.forward(x, depth=None) with depth_modality=False."""
    B, H, W, C = x.shape
    assert C % num_heads == 0
    hd = C // num_heads
    scale = hd ** (-0.5)
    N = H * W
    Np = _round_up(N, 128)     # lane-align the KV axis of the score tensor
    out_dtype = x.dtype

    # Parameter prep: fold the softmax scale into the q columns of w_qkv/b_qkv
    # (removes the per-step q*scale multiply) and cast weights to bf16.
    qkv_scale = jnp.concatenate([
        jnp.full((C,), scale, dtype=params["w_qkv"].dtype),
        jnp.ones((2 * C,), dtype=params["w_qkv"].dtype)])
    w_qkv = (params["w_qkv"] * qkv_scale).astype(compute_dtype)
    b_qkv = (params["b_qkv"] * qkv_scale).astype(compute_dtype)
    w_proj = params["w_proj"].astype(compute_dtype)
    b_proj = params["b_proj"].astype(compute_dtype)

    # Pad the token axis per batch *before* the qkv linear so the fused qkv
    # buffer comes out already padded (no extra HBM pass over the 3C-wide
    # activation); padded keys are masked inside the attention kernel and the
    # padded query rows are sliced off below.
    x_tok = x.reshape(B, N, C)
    if Np != N:
        x_tok = jnp.pad(x_tok, ((0, 0), (0, Np - N), (0, 0)))
    x2d = x_tok.reshape(B * Np, C).astype(compute_dtype)

    qkv = linear(x2d, w_qkv, b_qkv)                              # (B*Np, 3C)
    out2d = mha_proj(qkv, w_proj, b_proj, B=B, n_valid=N, n_padded=Np, C=C,
                     num_heads=num_heads, out_dtype=out_dtype)   # (B*Np, C)
    out = out2d.reshape(B, Np, C)[:, :N, :].reshape(B, H, W, C)
    return out, None   # depth path unused (depth_modality=False)


def reference_forward(x, params, num_heads):
    """Pure-JAX f32 reference mirroring the PyTorch code, for a sanity check."""
    B, H, W, C = x.shape
    hd = C // num_heads
    scale = hd ** (-0.5)
    N = H * W
    qkv = x.reshape(B * N, C) @ params["w_qkv"] + params["b_qkv"]
    qkv = qkv.reshape(B, N, 3, num_heads, hd)
    qkv = jnp.transpose(qkv, (2, 0, 3, 1, 4)).reshape(3, B * num_heads, N, hd)
    q, k, v = qkv[0], qkv[1], qkv[2]
    attn = (q * scale) @ jnp.swapaxes(k, -2, -1)
    attn = jax.nn.softmax(attn, axis=-1)
    o = attn @ v
    o = o.reshape(B, num_heads, H, W, hd)
    o = jnp.transpose(o, (0, 2, 3, 1, 4)).reshape(B * N, C)
    out = o @ params["w_proj"] + params["b_proj"]
    return out.reshape(B, H, W, C)


# ----------------------------------- main ------------------------------------

if __name__ == "__main__":
    B, H, W = 2, 8, 8
    dim, num_heads = 128, 8   # C = 128 keeps blocks lane-aligned; head_dim = 16

    key = jax.random.PRNGKey(0)
    kx, kq, kbq, kp, kbp = jax.random.split(key, 5)

    x = jax.random.normal(kx, (B, H, W, dim), dtype=jnp.float32)

    # Synthetic parameters (shapes from nn.Linear(dim, 3*dim), nn.Linear(dim, dim)).
    params = {
        "w_qkv": 0.02 * jax.random.normal(kq, (dim, 3 * dim), dtype=jnp.float32),
        "b_qkv": 0.02 * jax.random.normal(kbq, (3 * dim,), dtype=jnp.float32),
        "w_proj": 0.02 * jax.random.normal(kp, (dim, dim), dtype=jnp.float32),
        "b_proj": 0.02 * jax.random.normal(kbp, (dim,), dtype=jnp.float32),
    }

    out, depth_out = attention_forward(x, params, num_heads)
    out = jax.block_until_ready(out)

    ref = reference_forward(x, params, num_heads)
    assert out.shape == (B, H, W, dim)
    assert depth_out is None
    # bf16 operands with f32 accumulation, padded-key masking and the approx
    # EUP reciprocal give small numeric deltas vs the plain-XLA f32 reference.
    assert jnp.allclose(out, ref, atol=5e-3, rtol=5e-2), "mismatch vs reference"

    print("KERNEL_OK")
</pallas_src>

<mosaic_0001>
module attributes {stable_mosaic.version = 11 : i64} {
  func.func @linear_kernel(%arg0: i32, %arg1: i32, %arg2: i32, %arg3: memref<256x128xbf16, #tpu.memory_space<vmem>>, %arg4: memref<128x384xbf16, #tpu.memory_space<vmem>>, %arg5: memref<1x384xbf16, #tpu.memory_space<vmem>>, %arg6: memref<256x384xbf16, #tpu.memory_space<vmem>>, %arg7: memref<256x384xf32, #tpu.memory_space<vmem>>) attributes {dimension_semantics = [#tpu.dimension_semantics<parallel>, #tpu.dimension_semantics<parallel>, #tpu.dimension_semantics<arbitrary>], iteration_bounds = array<i64: 1, 1, 1>, scalar_prefetch = 0 : i64, scratch_operands = 1 : i64, tpu.core_type = #tpu.core_type<tc>, window_params = [{transform_indices = @transform_0, window_bounds = array<i64: 256, 128>}, {transform_indices = @transform_1, window_bounds = array<i64: 128, 384>}, {transform_indices = @transform_2, window_bounds = array<i64: 1, 384>}, {transform_indices = @transform_3, window_bounds = array<i64: 256, 384>}]} {
    %c0_i32 = arith.constant 0 : i32
    %0 = arith.cmpi eq, %arg2, %c0_i32 : i32
    %1 = arith.extui %0 : i1 to i32
    %c0_i32_0 = arith.constant 0 : i32
    %2 = arith.cmpi ne, %1, %c0_i32_0 : i32
    scf.if %2 {
      %cst_10 = arith.constant 0.000000e+00 : f32
      %12 = vector.broadcast %cst_10 : f32 to vector<256x384xf32>
      %c0_11 = arith.constant 0 : index
      %c0_12 = arith.constant 0 : index
      %13 = vector.load %arg7[%c0_11, %c0_12] : memref<256x384xf32, #tpu.memory_space<vmem>>, vector<256x384xf32>
      tpu.vector_store %arg7[%c0_11, %c0_12], %12 {strides = array<i32>} : memref<256x384xf32, #tpu.memory_space<vmem>>, vector<256x384xf32>,
    } else {
    }
    %c0 = arith.constant 0 : index
    %c0_1 = arith.constant 0 : index
    %3 = vector.load %arg7[%c0, %c0_1] : memref<256x384xf32, #tpu.memory_space<vmem>>, vector<256x384xf32>
    %c0_2 = arith.constant 0 : index
    %c0_3 = arith.constant 0 : index
    %4 = vector.load %arg3[%c0_2, %c0_3] : memref<256x128xbf16, #tpu.memory_space<vmem>>, vector<256x128xbf16>
    %c0_4 = arith.constant 0 : index
    %c0_5 = arith.constant 0 : index
    %5 = vector.load %arg4[%c0_4, %c0_5] : memref<128x384xbf16, #tpu.memory_space<vmem>>, vector<128x384xbf16>
    %cst = arith.constant dense<0.000000e+00> : vector<256x384xf32>
    %6 = tpu.matmul %4, %5, %cst {dimension_numbers = #tpu.dot_dimension_numbers<[1], [0], [0], [1], [0, 0, 1, 1], [], []>} : vector<256x128xbf16>, vector<128x384xbf16>, vector<256x384xf32> -> vector<256x384xf32>
    %7 = arith.addf %3, %6 : vector<256x384xf32>
    %c0_6 = arith.constant 0 : index
    %c0_7 = arith.constant 0 : index
    %8 = vector.load %arg7[%c0_6, %c0_7] : memref<256x384xf32, #tpu.memory_space<vmem>>, vector<256x384xf32>
    tpu.vector_store %arg7[%c0_6, %c0_7], %7 {strides = array<i32>} : memref<256x384xf32, #tpu.memory_space<vmem>>, vector<256x384xf32>,
    %c0_i32_8 = arith.constant 0 : i32
    %9 = arith.cmpi eq, %arg2, %c0_i32_8 : i32
    %10 = arith.extui %9 : i1 to i32
    %c0_i32_9 = arith.constant 0 : i32
    %11 = arith.cmpi ne, %10, %c0_i32_9 : i32
    scf.if %11 {
      %c0_10 = arith.constant 0 : index
      %c0_11 = arith.constant 0 : index
      %12 = vector.load %arg7[%c0_10, %c0_11] : memref<256x384xf32, #tpu.memory_space<vmem>>, vector<256x384xf32>
      %c0_12 = arith.constant 0 : index
      %c0_13 = arith.constant 0 : index
      %13 = vector.load %arg5[%c0_12, %c0_13] : memref<1x384xbf16, #tpu.memory_space<vmem>>, vector<1x384xbf16>
      %14 = arith.extf %13 : vector<1x384xbf16> to vector<1x384xf32>
      %15 = vector.broadcast %14 : vector<1x384xf32> to vector<256x384xf32>
      %16 = arith.addf %12, %15 : vector<256x384xf32>
      %17 = arith.truncf %16 : vector<256x384xf32> to vector<256x384xbf16>
      %c0_14 = arith.constant 0 : index
      %c0_15 = arith.constant 0 : index
      %18 = vector.load %arg6[%c0_14, %c0_15] : memref<256x384xbf16, #tpu.memory_space<vmem>>, vector<256x384xbf16>
      tpu.vector_store %arg6[%c0_14, %c0_15], %17 {strides = array<i32>} : memref<256x384xbf16, #tpu.memory_space<vmem>>, vector<256x384xbf16>,
    } else {
    }
    return
  }
  func.func @transform_0(%arg0: i32, %arg1: i32, %arg2: i32) -> (i32, i32) {
    %c0_i32 = arith.constant 0 : i32
    return %arg0, %arg2 : i32, i32
  }
  func.func @transform_1(%arg0: i32, %arg1: i32, %arg2: i32) -> (i32, i32) {
    %c0_i32 = arith.constant 0 : i32
    return %arg2, %arg1 : i32, i32
  }
  func.func @transform_2(%arg0: i32, %arg1: i32, %arg2: i32) -> (i32, i32) {
    %c0_i32 = arith.constant 0 : i32
    %c0_i32_0 = arith.constant 0 : i32
    return %c0_i32, %arg1 : i32, i32
  }
  func.func @transform_3(%arg0: i32, %arg1: i32, %arg2: i32) -> (i32, i32) {
    %c0_i32 = arith.constant 0 : i32
    return %arg0, %arg1 : i32, i32
  }
}

</mosaic_0001>

<llo_original>
// kernel: tpu_custom_call.1
$region0: #{tpu_custom_call.1}
  #allocation0 [shape = 'u32[]', space=smem, size = 0x4, offset = 0x4, fixed_abs, tag = 'smem constant byte address 0x4 - core index']
  #allocation1 [shape = 'u32[144,128]{1,0:T(1,128)}', space=vmem, size = 0x12000, scoped, tag = 'internal scratch']
  #allocation2 [shape = 'f32[256,384]{1,0:T(8,128)}', space=vmem, size = 0x60000, scoped, tag = 'scratch operand']
  %s0 = inlined_call_operand.hbm [shape: bf16[256,128], index: 0, kind: input, shape index: {}]
  %s1 = inlined_call_operand.hbm [shape: bf16[128,384], index: 1, kind: input, shape index: {}]
  %s2 = inlined_call_operand.vmem [shape: bf16[1,384], index: 2, kind: input, shape index: {}]
  %s3 = inlined_call_operand.hbm [shape: bf16[256,384], index: 3, kind: output, shape index: {}]
  %s4 = sld [smem:[#allocation0]]
  $region38: #{tpu_custom_call.1} parent=0
    _
  %s6 = ssub.s32 1, %s4
  %s7 = scalar_select 0, %s6, %s4
  $region1: #{tpu_custom_call.1} parent=0
    #allocation3 [shape = 'u8[65536]{0}', space=vmem, size = 0x10000, scoped, tag = 'input window, operand 0, single buffered']
    #allocation4 [shape = 's32[1]{0}', space=sflag, size = 0x4, scoped, tag = 'scoped memory for tpu_custom_call.1']
    #allocation5 [shape = 's32[1]{0}', space=sflag, size = 0x4, scoped, tag = 'scoped memory for tpu_custom_call.1']
    #allocation6 [shape = 'u8[98304]{0}', space=vmem, size = 0x18000, scoped, tag = 'input window, operand 1, single buffered']
    #allocation7 [shape = 's32[1]{0}', space=sflag, size = 0x4, scoped, tag = 'scoped memory for tpu_custom_call.1']
    #allocation8 [shape = 'u8[196608]{0}', space=vmem, size = 0x30000, scoped, tag = 'output window, operand 0, single buffered']
    %8 = vsyncpa [#allocation4], 0
    %9 = vsyncpa [#allocation7], 0
    %10 = vsyncpa [#allocation5], 0
    // Predicated region
    $region2: #{tpu_custom_call.1} parent=1 // pred_check
      _
    $region3: #{tpu_custom_call.1} parent=1 // pred_check_branch
      %12 = sbr.rel (0) target = $region5
    $region4: #{tpu_custom_call.1} parent=1 // pred_region
      %s14 = ssub.s32 2048, 2048
      %15 = vsyncadd [#allocation4], %s14
      %s16 = sshll.u32 [#allocation3], 4
      %s17 = int_to_ptr.vmem [resolvable:$true] %s16
      %22 = dma.hbm_to_vmem [thread:$0]  %s0, 2048, %s17, [#allocation4], 64, 64, 4
    $region5: #{tpu_custom_call.1} parent=1 // pred_fallthru
      _
    // Predicated region
    $region6: #{tpu_custom_call.1} parent=1 // pred_check
      _
    $region7: #{tpu_custom_call.1} parent=1 // pred_check_branch
      %24 = sbr.rel (0) target = $region9
    $region8: #{tpu_custom_call.1} parent=1 // pred_region
      %s26 = ssub.s32 3072, 3072
      %27 = vsyncadd [#allocation7], %s26
      %s28 = sshll.u32 [#allocation6], 4
      %s29 = int_to_ptr.vmem [resolvable:$true] %s28
      %34 = dma.hbm_to_vmem [thread:$0]  %s1, 3072, %s29, [#allocation7], 192, 192, 12
    $region9: #{tpu_custom_call.1} parent=1 // pred_fallthru
      _
    // Predicated region
    $region10: #{tpu_custom_call.1} parent=1 // pred_check
      _
    $region11: #{tpu_custom_call.1} parent=1 // pred_check_branch
      %36 = sbr.rel (0) target = $region13
    $region12: #{tpu_custom_call.1} parent=1 // pred_region
      _
    $region13: #{tpu_custom_call.1} parent=1 // pred_fallthru
      _
    // Predicated region
    $region14: #{tpu_custom_call.1} parent=1 // pred_check
      _
    $region15: #{tpu_custom_call.1} parent=1 // pred_check_branch
      %38 = sbr.rel (0) target = $region17
    $region16: #{tpu_custom_call.1} parent=1 // pred_region
      %39 = dma.done [#allocation4], 2048
    $region17: #{tpu_custom_call.1} parent=1 // pred_fallthru
      _
    // Predicated region
    $region18: #{tpu_custom_call.1} parent=1 // pred_check
      _
    $region19: #{tpu_custom_call.1} parent=1 // pred_check_branch
      %41 = sbr.rel (0) target = $region21
    $region20: #{tpu_custom_call.1} parent=1 // pred_region
      %42 = dma.done [#allocation7], 3072
    $region21: #{tpu_custom_call.1} parent=1 // pred_fallthru
      _
    %p44 = scmp.eq.s32.totalorder 0, 0
    // Predicated region
    $region22: #{tpu_custom_call.1} parent=1 // pred_check
      %p45 = pneg %p44
    $region23: #{tpu_custom_call.1} parent=1 // pred_check_branch
      %47 = sbr.rel (%p45) target = $region25
    $region24: #{tpu_custom_call.1} parent=1 // pred_region
      %48 = vst [vmem:[#allocation2] sm:$0xff] 0.0
      %49 = vst [vmem:[#allocation2 + $0x8] sm:$0xff] 0.0
      %50 = vst [vmem:[#allocation2 + $0x10] sm:$0xff] 0.0
      %51 = vst [vmem:[#allocation2 + $0x18] sm:$0xff] 0.0
      %52 = vst [vmem:[#allocation2 + $0x20] sm:$0xff] 0.0
      %53 = vst [vmem:[#allocation2 + $0x28] sm:$0xff] 0.0
      %54 = vst [vmem:[#allocation2 + $0x30] sm:$0xff] 0.0
      %55 = vst [vmem:[#allocation2 + $0x38] sm:$0xff] 0.0
      %56 = vst [vmem:[#allocation2 + $0x40] sm:$0xff] 0.0
      %57 = vst [vmem:[#allocation2 + $0x48] sm:$0xff] 0.0
      %58 = vst [vmem:[#allocation2 + $0x50] sm:$0xff] 0.0
      %59 = vst [vmem:[#allocation2 + $0x58] sm:$0xff] 0.0
      %60 = vst [vmem:[#allocation2 + $0x60] sm:$0xff] 0.0
      %61 = vst [vmem:[#allocation2 + $0x68] sm:$0xff] 0.0
      %62 = vst [vmem:[#allocation2 + $0x70] sm:$0xff] 0.0
      %63 = vst [vmem:[#allocation2 + $0x78] sm:$0xff] 0.0
      %64 = vst [vmem:[#allocation2 + $0x80] sm:$0xff] 0.0
      %65 = vst [vmem:[#allocation2 + $0x88] sm:$0xff] 0.0
      %66 = vst [vmem:[#allocation2 + $0x90] sm:$0xff] 0.0
      %67 = vst [vmem:[#allocation2 + $0x98] sm:$0xff] 0.0
      %68 = vst [vmem:[#allocation2 + $0xa0] sm:$0xff] 0.0
      %69 = vst [vmem:[#allocation2 + $0xa8] sm:$0xff] 0.0
      %70 = vst [vmem:[#allocation2 + $0xb0] sm:$0xff] 0.0
      %71 = vst [vmem:[#allocation2 + $0xb8] sm:$0xff] 0.0
      %72 = vst [vmem:[#allocation2 + $0xc0] sm:$0xff] 0.0
      %73 = vst [vmem:[#allocation2 + $0xc8] sm:$0xff] 0.0
      %74 = vst [vmem:[#allocation2 + $0xd0] sm:$0xff] 0.0
      %75 = vst [vmem:[#allocation2 + $0xd8] sm:$0xff] 0.0
      %76 = vst [vmem:[#allocation2 + $0xe0] sm:$0xff] 0.0
      %77 = vst [vmem:[#allocation2 + $0xe8] sm:$0xff] 0.0
      %78 = vst [vmem:[#allocation2 + $0xf0] sm:$0xff] 0.0
      %79 = vst [vmem:[#allocation2 + $0xf8] sm:$0xff] 0.0
      %80 = vst [vmem:[#allocation2 + $0x100] sm:$0xff] 0.0
      %81 = vst [vmem:[#allocation2 + $0x108] sm:$0xff] 0.0
      %82 = vst [vmem:[#allocation2 + $0x110] sm:$0xff] 0.0
      %83 = vst [vmem:[#allocation2 + $0x118] sm:$0xff] 0.0
      %84 = vst [vmem:[#allocation2 + $0x120] sm:$0xff] 0.0
      %85 = vst [vmem:[#allocation2 + $0x128] sm:$0xff] 0.0
      %86 = vst [vmem:[#allocation2 + $0x130] sm:$0xff] 0.0
      %87 = vst [vmem:[#allocation2 + $0x138] sm:$0xff] 0.0
      %88 = vst [vmem:[#allocation2 + $0x140] sm:$0xff] 0.0
      %89 = vst [vmem:[#allocation2 + $0x148] sm:$0xff] 0.0
      %90 = vst [vmem:[#allocation2 + $0x150] sm:$0xff] 0.0
      %91 = vst [vmem:[#allocation2 + $0x158] sm:$0xff] 0.0
      %92 = vst [vmem:[#allocation2 + $0x160] sm:$0xff] 0.0
      %93 = vst [vmem:[#allocation2 + $0x168] sm:$0xff] 0.0
      %94 = vst [vmem:[#allocation2 + $0x170] sm:$0xff] 0.0
      %95 = vst [vmem:[#allocation2 + $0x178] sm:$0xff] 0.0
      %96 = vst [vmem:[#allocation2 + $0x180] sm:$0xff] 0.0
      %97 = vst [vmem:[#allocation2 + $0x188] sm:$0xff] 0.0
      %98 = vst [vmem:[#allocation2 + $0x190] sm:$0xff] 0.0
      %99 = vst [vmem:[#allocation2 + $0x198] sm:$0xff] 0.0
      %100 = vst [vmem:[#allocation2 + $0x1a0] sm:$0xff] 0.0
      %101 = vst [vmem:[#allocation2 + $0x1a8] sm:$0xff] 0.0
      %102 = vst [vmem:[#allocation2 + $0x1b0] sm:$0xff] 0.0
      %103 = vst [vmem:[#allocation2 + $0x1b8] sm:$0xff] 0.0
      %104 = vst [vmem:[#allocation2 + $0x1c0] sm:$0xff] 0.0
      %105 = vst [vmem:[#allocation2 + $0x1c8] sm:$0xff] 0.0
      %106 = vst [vmem:[#allocation2 + $0x1d0] sm:$0xff] 0.0
      %107 = vst [vmem:[#allocation2 + $0x1d8] sm:$0xff] 0.0
      %108 = vst [vmem:[#allocation2 + $0x1e0] sm:$0xff] 0.0
      %109 = vst [vmem:[#allocation2 + $0x1e8] sm:$0xff] 0.0
      %110 = vst [vmem:[#allocation2 + $0x1f0] sm:$0xff] 0.0
      %111 = vst [vmem:[#allocation2 + $0x1f8] sm:$0xff] 0.0
      %112 = vst [vmem:[#allocation2 + $0x200] sm:$0xff] 0.0
      %113 = vst [vmem:[#allocation2 + $0x208] sm:$0xff] 0.0
      %114 = vst [vmem:[#allocation2 + $0x210] sm:$0xff] 0.0
      %115 = vst [vmem:[#allocation2 + $0x218] sm:$0xff] 0.0
      %116 = vst [vmem:[#allocation2 + $0x220] sm:$0xff] 0.0
      %117 = vst [vmem:[#allocation2 + $0x228] sm:$0xff] 0.0
      %118 = vst [vmem:[#allocation2 + $0x230] sm:$0xff] 0.0
      %119 = vst [vmem:[#allocation2 + $0x238] sm:$0xff] 0.0
      %120 = vst [vmem:[#allocation2 + $0x240] sm:$0xff] 0.0
      %121 = vst [vmem:[#allocation2 + $0x248] sm:$0xff] 0.0
      %122 = vst [vmem:[#allocation2 + $0x250] sm:$0xff] 0.0
      %123 = vst [vmem:[#allocation2 + $0x258] sm:$0xff] 0.0
      %124 = vst [vmem:[#allocation2 + $0x260] sm:$0xff] 0.0
      %125 = vst [vmem:[#allocation2 + $0x268] sm:$0xff] 0.0
      %126 = vst [vmem:[#allocation2 + $0x270] sm:$0xff] 0.0
      %127 = vst [vmem:[#allocation2 + $0x278] sm:$0xff] 0.0
      %128 = vst [vmem:[#allocation2 + $0x280] sm:$0xff] 0.0
      %129 = vst [vmem:[#allocation2 + $0x288] sm:$0xff] 0.0
      %130 = vst [vmem:[#allocation2 + $0x290] sm:$0xff] 0.0
      %131 = vst [vmem:[#allocation2 + $0x298] sm:$0xff] 0.0
      %132 = vst [vmem:[#allocation2 + $0x2a0] sm:$0xff] 0.0
      %133 = vst [vmem:[#allocation2 + $0x2a8] sm:$0xff] 0.0
      %134 = vst [vmem:[#allocation2 + $0x2b0] sm:$0xff] 0.0
      %135 = vst [vmem:[#allocation2 + $0x2b8] sm:$0xff] 0.0
      %136 = vst [vmem:[#allocation2 + $0x2c0] sm:$0xff] 0.0
      %137 = vst [vmem:[#allocation2 + $0x2c8] sm:$0xff] 0.0
      %138 = vst [vmem:[#allocation2 + $0x2d0] sm:$0xff] 0.0
      %139 = vst [vmem:[#allocation2 + $0x2d8] sm:$0xff] 0.0
      %140 = vst [vmem:[#allocation2 + $0x2e0] sm:$0xff] 0.0
      %141 = vst [vmem:[#allocation2 + $0x2e8] sm:$0xff] 0.0
      %142 = vst [vmem:[#allocation2 + $0x2f0] sm:$0xff] 0.0
      %143 = vst [vmem:[#allocation2 + $0x2f8] sm:$0xff] 0.0
    $region25: #{tpu_custom_call.1} parent=1 // pred_fallthru
      _
    %v144 = vld [vmem:[#allocation2] sm:$0xff]
    %v145 = vld [vmem:[#allocation2 + $0x8] sm:$0xff]
    %v146 = vld [vmem:[#allocation2 + $0x10] sm:$0xff]
    %v147 = vld [vmem:[#allocation2 + $0x18] sm:$0xff]
    %v148 = vld [vmem:[#allocation2 + $0x20] sm:$0xff]
    %v149 = vld [vmem:[#allocation2 + $0x28] sm:$0xff]
    %v150 = vld [vmem:[#allocation2 + $0x30] sm:$0xff]
    %v151 = vld [vmem:[#allocation2 + $0x38] sm:$0xff]
    %v152 = vld [vmem:[#allocation2 + $0x40] sm:$0xff]
    %v153 = vld [vmem:[#allocation2 + $0x48] sm:$0xff]
    %v154 = vld [vmem:[#allocation2 + $0x50] sm:$0xff]
    %v155 = vld [vmem:[#allocation2 + $0x58] sm:$0xff]
    %v156 = vld [vmem:[#allocation2 + $0x60] sm:$0xff]
    %v157 = vld [vmem:[#allocation2 + $0x68] sm:$0xff]
    %v158 = vld [vmem:[#allocation2 + $0x70] sm:$0xff]
    %v159 = vld [vmem:[#allocation2 + $0x78] sm:$0xff]
    %v160 = vld [vmem:[#allocation2 + $0x80] sm:$0xff]
    %v161 = vld [vmem:[#allocation2 + $0x88] sm:$0xff]
    %v162 = vld [vmem:[#allocation2 + $0x90] sm:$0xff]
    %v163 = vld [vmem:[#allocation2 + $0x98] sm:$0xff]
    %v164 = vld [vmem:[#allocation2 + $0xa0] sm:$0xff]
    %v165 = vld [vmem:[#allocation2 + $0xa8] sm:$0xff]
    %v166 = vld [vmem:[#allocation2 + $0xb0] sm:$0xff]
    %v167 = vld [vmem:[#allocation2 + $0xb8] sm:$0xff]
    %v168 = vld [vmem:[#allocation2 + $0xc0] sm:$0xff]
    %v169 = vld [vmem:[#allocation2 + $0xc8] sm:$0xff]
    %v170 = vld [vmem:[#allocation2 + $0xd0] sm:$0xff]
    %v171 = vld [vmem:[#allocation2 + $0xd8] sm:$0xff]
    %v172 = vld [vmem:[#allocation2 + $0xe0] sm:$0xff]
    %v173 = vld [vmem:[#allocation2 + $0xe8] sm:$0xff]
    %v174 = vld [vmem:[#allocation2 + $0xf0] sm:$0xff]
    %v175 = vld [vmem:[#allocation2 + $0xf8] sm:$0xff]
    %v176 = vld [vmem:[#allocation2 + $0x100] sm:$0xff]
    %v177 = vld [vmem:[#allocation2 + $0x108] sm:$0xff]
    %v178 = vld [vmem:[#allocation2 + $0x110] sm:$0xff]
    %v179 = vld [vmem:[#allocation2 + $0x118] sm:$0xff]
    %v180 = vld [vmem:[#allocation2 + $0x120] sm:$0xff]
    %v181 = vld [vmem:[#allocation2 + $0x128] sm:$0xff]
    %v182 = vld [vmem:[#allocation2 + $0x130] sm:$0xff]
    %v183 = vld [vmem:[#allocation2 + $0x138] sm:$0xff]
    %v184 = vld [vmem:[#allocation2 + $0x140] sm:$0xff]
    %v185 = vld [vmem:[#allocation2 + $0x148] sm:$0xff]
    %v186 = vld [vmem:[#allocation2 + $0x150] sm:$0xff]
    %v187 = vld [vmem:[#allocation2 + $0x158] sm:$0xff]
    %v188 = vld [vmem:[#allocation2 + $0x160] sm:$0xff]
    %v189 = vld [vmem:[#allocation2 + $0x168] sm:$0xff]
    %v190 = vld [vmem:[#allocation2 + $0x170] sm:$0xff]
    %v191 = vld [vmem:[#allocation2 + $0x178] sm:$0xff]
    %v192 = vld [vmem:[#allocation2 + $0x180] sm:$0xff]
    %v193 = vld [vmem:[#allocation2 + $0x188] sm:$0xff]
    %v194 = vld [vmem:[#allocation2 + $0x190] sm:$0xff]
    %v195 = vld [vmem:[#allocation2 + $0x198] sm:$0xff]
    %v196 = vld [vmem:[#allocation2 + $0x1a0] sm:$0xff]
    %v197 = vld [vmem:[#allocation2 + $0x1a8] sm:$0xff]
    %v198 = vld [vmem:[#allocation2 + $0x1b0] sm:$0xff]
    %v199 = vld [vmem:[#allocation2 + $0x1b8] sm:$0xff]
    %v200 = vld [vmem:[#allocation2 + $0x1c0] sm:$0xff]
    %v201 = vld [vmem:[#allocation2 + $0x1c8] sm:$0xff]
    %v202 = vld [vmem:[#allocation2 + $0x1d0] sm:$0xff]
    %v203 = vld [vmem:[#allocation2 + $0x1d8] sm:$0xff]
    %v204 = vld [vmem:[#allocation2 + $0x1e0] sm:$0xff]
    %v205 = vld [vmem:[#allocation2 + $0x1e8] sm:$0xff]
    %v206 = vld [vmem:[#allocation2 + $0x1f0] sm:$0xff]
    %v207 = vld [vmem:[#allocation2 + $0x1f8] sm:$0xff]
    %v208 = vld [vmem:[#allocation2 + $0x200] sm:$0xff]
    %v209 = vld [vmem:[#allocation2 + $0x208] sm:$0xff]
    %v210 = vld [vmem:[#allocation2 + $0x210] sm:$0xff]
    %v211 = vld [vmem:[#allocation2 + $0x218] sm:$0xff]
    %v212 = vld [vmem:[#allocation2 + $0x220] sm:$0xff]
    %v213 = vld [vmem:[#allocation2 + $0x228] sm:$0xff]
    %v214 = vld [vmem:[#allocation2 + $0x230] sm:$0xff]
    %v215 = vld [vmem:[#allocation2 + $0x238] sm:$0xff]
    %v216 = vld [vmem:[#allocation2 + $0x240] sm:$0xff]
    %v217 = vld [vmem:[#allocation2 + $0x248] sm:$0xff]
    %v218 = vld [vmem:[#allocation2 + $0x250] sm:$0xff]
    %v219 = vld [vmem:[#allocation2 + $0x258] sm:$0xff]
    %v220 = vld [vmem:[#allocation2 + $0x260] sm:$0xff]
    %v221 = vld [vmem:[#allocation2 + $0x268] sm:$0xff]
    %v222 = vld [vmem:[#allocation2 + $0x270] sm:$0xff]
    %v223 = vld [vmem:[#allocation2 + $0x278] sm:$0xff]
    %v224 = vld [vmem:[#allocation2 + $0x280] sm:$0xff]
    %v225 = vld [vmem:[#allocation2 + $0x288] sm:$0xff]
    %v226 = vld [vmem:[#allocation2 + $0x290] sm:$0xff]
    %v227 = vld [vmem:[#allocation2 + $0x298] sm:$0xff]
    %v228 = vld [vmem:[#allocation2 + $0x2a0] sm:$0xff]
    %v229 = vld [vmem:[#allocation2 + $0x2a8] sm:$0xff]
    %v230 = vld [vmem:[#allocation2 + $0x2b0] sm:$0xff]
    %v231 = vld [vmem:[#allocation2 + $0x2b8] sm:$0xff]
    %v232 = vld [vmem:[#allocation2 + $0x2c0] sm:$0xff]
    %v233 = vld [vmem:[#allocation2 + $0x2c8] sm:$0xff]
    %v234 = vld [vmem:[#allocation2 + $0x2d0] sm:$0xff]
    %v235 = vld [vmem:[#allocation2 + $0x2d8] sm:$0xff]
    %v236 = vld [vmem:[#allocation2 + $0x2e0] sm:$0xff]
    %v237 = vld [vmem:[#allocation2 + $0x2e8] sm:$0xff]
    %v238 = vld [vmem:[#allocation2 + $0x2f0] sm:$0xff]
    %v239 = vld [vmem:[#allocation2 + $0x2f8] sm:$0xff]
    %v240 = vld [vmem:[#allocation3] sm:$0xf]
    %v241 = vld [vmem:[#allocation3 + $0x4] sm:$0xf]
    %v242 = vld [vmem:[#allocation3 + $0x8] sm:$0xf]
    %v243 = vld [vmem:[#allocation3 + $0xc] sm:$0xf]
    %v244 = vld [vmem:[#allocation3 + $0x10] sm:$0xf]
    %v245 = vld [vmem:[#allocation3 + $0x14] sm:$0xf]
    %v246 = vld [vmem:[#allocation3 + $0x18] sm:$0xf]
    %v247 = vld [vmem:[#allocation3 + $0x1c] sm:$0xf]
    %v248 = vld [vmem:[#allocation3 + $0x20] sm:$0xf]
    %v249 = vld [vmem:[#allocation3 + $0x24] sm:$0xf]
    %v250 = vld [vmem:[#allocation3 + $0x28] sm:$0xf]
    %v251 = vld [vmem:[#allocation3 + $0x2c] sm:$0xf]
    %v252 = vld [vmem:[#allocation3 + $0x30] sm:$0xf]
    %v253 = vld [vmem:[#allocation3 + $0x34] sm:$0xf]
    %v254 = vld [vmem:[#allocation3 + $0x38] sm:$0xf]
    %v255 = vld [vmem:[#allocation3 + $0x3c] sm:$0xf]
    %v256 = vld [vmem:[#allocation3 + $0x40] sm:$0xf]
    %v257 = vld [vmem:[#allocation3 + $0x44] sm:$0xf]
    %v258 = vld [vmem:[#allocation3 + $0x48] sm:$0xf]
    %v259 = vld [vmem:[#allocation3 + $0x4c] sm:$0xf]
    %v260 = vld [vmem:[#allocation3 + $0x50] sm:$0xf]
    %v261 = vld [vmem:[#allocation3 + $0x54] sm:$0xf]
    %v262 = vld [vmem:[#allocation3 + $0x58] sm:$0xf]
    %v263 = vld [vmem:[#allocation3 + $0x5c] sm:$0xf]
    %v264 = vld [vmem:[#allocation3 + $0x60] sm:$0xf]
    %v265 = vld [vmem:[#allocation3 + $0x64] sm:$0xf]
    %v266 = vld [vmem:[#allocation3 + $0x68] sm:$0xf]
    %v267 = vld [vmem:[#allocation3 + $0x6c] sm:$0xf]
    %v268 = vld [vmem:[#allocation3 + $0x70] sm:$0xf]
    %v269 = vld [vmem:[#allocation3 + $0x74] sm:$0xf]
    %v270 = vld [vmem:[#allocation3 + $0x78] sm:$0xf]
    %v271 = vld [vmem:[#allocation3 + $0x7c] sm:$0xf]
    %v272 = vld [vmem:[#allocation6] sm:$0xff]
    %v273 = vld [vmem:[#allocation6 + $0x8] sm:$0xf]
    %v274 = vld [vmem:[#allocation6 + $0xc] sm:$0xff]
    %v275 = vld [vmem:[#allocation6 + $0x14] sm:$0xf]
    %v276 = vld [vmem:[#allocation6 + $0x18] sm:$0xff]
    %v277 = vld [vmem:[#allocation6 + $0x20] sm:$0xf]
    %v278 = vld [vmem:[#allocation6 + $0x24] sm:$0xff]
    %v279 = vld [vmem:[#allocation6 + $0x2c] sm:$0xf]
    %v280 = vld [vmem:[#allocation6 + $0x30] sm:$0xff]
    %v281 = vld [vmem:[#allocation6 + $0x38] sm:$0xf]
    %v282 = vld [vmem:[#allocation6 + $0x3c] sm:$0xff]
    %v283 = vld [vmem:[#allocation6 + $0x44] sm:$0xf]
    %v284 = vld [vmem:[#allocation6 + $0x48] sm:$0xff]
    %v285 = vld [vmem:[#allocation6 + $0x50] sm:$0xf]
    %v286 = vld [vmem:[#allocation6 + $0x54] sm:$0xff]
    %v287 = vld [vmem:[#allocation6 + $0x5c] sm:$0xf]
    %v288 = vld [vmem:[#allocation6 + $0x60] sm:$0xff]
    %v289 = vld [vmem:[#allocation6 + $0x68] sm:$0xf]
    %v290 = vld [vmem:[#allocation6 + $0x6c] sm:$0xff]
    %v291 = vld [vmem:[#allocation6 + $0x74] sm:$0xf]
    %v292 = vld [vmem:[#allocation6 + $0x78] sm:$0xff]
    %v293 = vld [vmem:[#allocation6 + $0x80] sm:$0xf]
    %v294 = vld [vmem:[#allocation6 + $0x84] sm:$0xff]
    %v295 = vld [vmem:[#allocation6 + $0x8c] sm:$0xf]
    %v296 = vld [vmem:[#allocation6 + $0x90] sm:$0xff]
    %v297 = vld [vmem:[#allocation6 + $0x98] sm:$0xf]
    %v298 = vld [vmem:[#allocation6 + $0x9c] sm:$0xff]
    %v299 = vld [vmem:[#allocation6 + $0xa4] sm:$0xf]
    %v300 = vld [vmem:[#allocation6 + $0xa8] sm:$0xff]
    %v301 = vld [vmem:[#allocation6 + $0xb0] sm:$0xf]
    %v302 = vld [vmem:[#allocation6 + $0xb4] sm:$0xff]
    %v303 = vld [vmem:[#allocation6 + $0xbc] sm:$0xf]
    %v336 = vunpack.c.l.b16 %v240
    %v337 = vunpack.c.l.b16 %v241
    %v338 = vunpack.c.l.b16 %v242
    %v339 = vunpack.c.l.b16 %v243
    %v340 = vunpack.c.l.b16 %v244
    %v341 = vunpack.c.l.b16 %v245
    %v342 = vunpack.c.l.b16 %v246
    %v343 = vunpack.c.l.b16 %v247
    %v344 = vunpack.c.l.b16 %v248
    %v345 = vunpack.c.l.b16 %v249
    %v346 = vunpack.c.l.b16 %v250
    %v347 = vunpack.c.l.b16 %v251
    %v348 = vunpack.c.l.b16 %v252
    %v349 = vunpack.c.l.b16 %v253
    %v350 = vunpack.c.l.b16 %v254
    %v351 = vunpack.c.l.b16 %v255
    %v352 = vunpack.c.l.b16 %v256
    %v353 = vunpack.c.l.b16 %v257
    %v354 = vunpack.c.l.b16 %v258
    %v355 = vunpack.c.l.b16 %v259
    %v356 = vunpack.c.l.b16 %v260
    %v357 = vunpack.c.l.b16 %v261
    %v358 = vunpack.c.l.b16 %v262
    %v359 = vunpack.c.l.b16 %v263
    %v360 = vunpack.c.l.b16 %v264
    %v361 = vunpack.c.l.b16 %v265
    %v362 = vunpack.c.l.b16 %v266
    %v363 = vunpack.c.l.b16 %v267
    %v364 = vunpack.c.l.b16 %v268
    %v365 = vunpack.c.l.b16 %v269
    %v366 = vunpack.c.l.b16 %v270
    %v367 = vunpack.c.l.b16 %v271
    %v368 = vpack.c.b16 %v337, %v336
    %v369 = vpack.c.b16 %v339, %v338
    %v370 = vpack.c.b16 %v341, %v340
    %v371 = vpack.c.b16 %v343, %v342
    %v372 = vpack.c.b16 %v345, %v344
    %v373 = vpack.c.b16 %v347, %v346
    %v374 = vpack.c.b16 %v349, %v348
    %v375 = vpack.c.b16 %v351, %v350
    %v376 = vpack.c.b16 %v353, %v352
    %v377 = vpack.c.b16 %v355, %v354
    %v378 = vpack.c.b16 %v357, %v356
    %v379 = vpack.c.b16 %v359, %v358
    %v380 = vpack.c.b16 %v361, %v360
    %v381 = vpack.c.b16 %v363, %v362
    %v382 = vpack.c.b16 %v365, %v364
    %v383 = vpack.c.b16 %v367, %v366
    %v432 = vunpack.c.l.b16 %v272
    %v433 = vunpack.c.h.b16 %v272
    %v434 = vunpack.c.l.b16 %v273
    %v435 = vunpack.c.l.b16 %v274
    %v436 = vunpack.c.h.b16 %v274
    %v437 = vunpack.c.l.b16 %v275
    %v438 = vunpack.c.l.b16 %v276
    %v439 = vunpack.c.h.b16 %v276
    %v440 = vunpack.c.l.b16 %v277
    %v441 = vunpack.c.l.b16 %v278
    %v442 = vunpack.c.h.b16 %v278
    %v443 = vunpack.c.l.b16 %v279
    %v444 = vunpack.c.l.b16 %v280
    %v445 = vunpack.c.h.b16 %v280
    %v446 = vunpack.c.l.b16 %v281
    %v447 = vunpack.c.l.b16 %v282
    %v448 = vunpack.c.h.b16 %v282
    %v449 = vunpack.c.l.b16 %v283
    %v450 = vunpack.c.l.b16 %v284
    %v451 = vunpack.c.h.b16 %v284
    %v452 = vunpack.c.l.b16 %v285
    %v453 = vunpack.c.l.b16 %v286
    %v454 = vunpack.c.h.b16 %v286
    %v455 = vunpack.c.l.b16 %v287
    %v456 = vunpack.c.l.b16 %v288
    %v457 = vunpack.c.h.b16 %v288
    %v458 = vunpack.c.l.b16 %v289
    %v459 = vunpack.c.l.b16 %v290
    %v460 = vunpack.c.h.b16 %v290
    %v461 = vunpack.c.l.b16 %v291
    %v462 = vunpack.c.l.b16 %v292
    %v463 = vunpack.c.h.b16 %v292
    %v464 = vunpack.c.l.b16 %v293
    %v465 = vunpack.c.l.b16 %v294
    %v466 = vunpack.c.h.b16 %v294
    %v467 = vunpack.c.l.b16 %v295
    %v468 = vunpack.c.l.b16 %v296
    %v469 = vunpack.c.h.b16 %v296
    %v470 = vunpack.c.l.b16 %v297
    %v471 = vunpack.c.l.b16 %v298
    %v472 = vunpack.c.h.b16 %v298
    %v473 = vunpack.c.l.b16 %v299
    %v474 = vunpack.c.l.b16 %v300
    %v475 = vunpack.c.h.b16 %v300
    %v476 = vunpack.c.l.b16 %v301
    %v477 = vunpack.c.l.b16 %v302
    %v478 = vunpack.c.h.b16 %v302
    %v479 = vunpack.c.l.b16 %v303
    %v480 = vpack.c.b16 %v435, %v432
    %v481 = vpack.c.b16 %v436, %v433
    %v482 = vpack.c.b16 %v437, %v434
    %v483 = vpack.c.b16 %v441, %v438
    %v484 = vpack.c.b16 %v442, %v439
    %v485 = vpack.c.b16 %v443, %v440
    %v486 = vpack.c.b16 %v447, %v444
    %v487 = vpack.c.b16 %v448, %v445
    %v488 = vpack.c.b16 %v449, %v446
    %v489 = vpack.c.b16 %v453, %v450
    %v490 = vpack.c.b16 %v454, %v451
    %v491 = vpack.c.b16 %v455, %v452
    %v492 = vpack.c.b16 %v459, %v456
    %v493 = vpack.c.b16 %v460, %v457
    %v494 = vpack.c.b16 %v461, %v458
    %v495 = vpack.c.b16 %v465, %v462
    %v496 = vpack.c.b16 %v466, %v463
    %v497 = vpack.c.b16 %v467, %v464
    %v498 = vpack.c.b16 %v471, %v468
    %v499 = vpack.c.b16 %v472, %v469
    %v500 = vpack.c.b16 %v473, %v470
    %v501 = vpack.c.b16 %v477, %v474
    %v502 = vpack.c.b16 %v478, %v475
    %v503 = vpack.c.b16 %v479, %v476
    %528 = vmatprep.subr.bf16.mxu0 %v502
    %529 = vmatpush1.bf16.msra.mxu0 %v501
    %530 = vmatprep.subr.bf16.mxu0 %v499
    %531 = vmatpush1.bf16.msra.mxu0 %v498
    %532 = vmatprep.subr.bf16.mxu0 %v496
    %533 = vmatpush1.bf16.msra.mxu0 %v495
    %534 = vmatprep.subr.bf16.mxu0 %v493
    %535 = vmatpush1.bf16.msra.mxu0 %v492
    %536 = vmatprep.subr.bf16.mxu0 %v490
    %537 = vmatpush1.bf16.msra.mxu0 %v489
    %538 = vmatprep.subr.bf16.mxu0 %v487
    %539 = vmatpush1.bf16.msra.mxu0 %v486
    %540 = vmatprep.subr.bf16.mxu0 %v484
    %541 = vmatpush1.bf16.msra.mxu0 %v483
    %542 = vmatprep.subr.bf16.mxu0 %v481
    %543 = vmatpush1.bf16.msra.mxu0 %v480
    %544 = vmatprep.subr.bf16.mxu0 0
    %545 = vmatpush2.bf16.msra.mxu0 0
    %546 = vmatprep.subr.bf16.mxu0 0
    %547 = vmatpush2.bf16.msra.mxu0 0
    %548 = vmatprep.subr.bf16.mxu0 0
    %549 = vmatpush2.bf16.msra.mxu0 0
    %550 = vmatprep.subr.bf16.mxu0 0
    %551 = vmatpush2.bf16.msra.mxu0 0
    %552 = vmatprep.subr.bf16.mxu0 0
    %553 = vmatpush2.bf16.msra.mxu0 0
    %554 = vmatprep.subr.bf16.mxu0 0
    %555 = vmatpush2.bf16.msra.mxu0 0
    %556 = vmatprep.subr.bf16.mxu0 0
    %557 = vmatpush2.bf16.msra.mxu0 0
    %558 = vmatprep.subr.bf16.mxu0 0
    %559 = vmatpush2.bf16.msra.mxu0 0
    %560 = vmatprep.mubr.bf16.mxu0 0
    %561 = vmatmul.mubr.bf16.gmra.mxu0 %v368
    %v562 = vpop.f32.mrf.mxu0
    %v563 = vadd.f32 0.0, %v562
    %v564 = vpop.f32.mrf.mxu0
    %v565 = vadd.f32 0.0, %v564
    %v566 = vpop.f32.mrf.mxu0
    %v567 = vadd.f32 0.0, %v566
    %v568 = vpop.f32.mrf.mxu0
    %v569 = vadd.f32 0.0, %v568
    %570 = vmatprep.mubr.bf16.mxu0 0
    %571 = vmatmul.mubr.bf16.gmra.mxu0 %v369
    %v572 = vpop.f32.mrf.mxu0
    %v573 = vadd.f32 0.0, %v572
    %v574 = vpop.f32.mrf.mxu0
    %v575 = vadd.f32 0.0, %v574
    %v576 = vpop.f32.mrf.mxu0
    %v577 = vadd.f32 0.0, %v576
    %v578 = vpop.f32.mrf.mxu0
    %v579 = vadd.f32 0.0, %v578
    %580 = vmatprep.mubr.bf16.mxu0 0
    %581 = vmatmul.mubr.bf16.gmra.mxu0 %v370
    %v582 = vpop.f32.mrf.mxu0
    %v583 = vadd.f32 0.0, %v582
    %v584 = vpop.f32.mrf.mxu0
    %v585 = vadd.f32 0.0, %v584
    %v586 = vpop.f32.mrf.mxu0
    %v587 = vadd.f32 0.0, %v586
    %v588 = vpop.f32.mrf.mxu0
    %v589 = vadd.f32 0.0, %v588
    %590 = vmatprep.mubr.bf16.mxu0 0
    %591 = vmatmul.mubr.bf16.gmra.mxu0 %v371
    %v592 = vpop.f32.mrf.mxu0
    %v593 = vadd.f32 0.0, %v592
    %v594 = vpop.f32.mrf.mxu0
    %v595 = vadd.f32 0.0, %v594
    %v596 = vpop.f32.mrf.mxu0
    %v597 = vadd.f32 0.0, %v596
    %v598 = vpop.f32.mrf.mxu0
    %v599 = vadd.f32 0.0, %v598
    %600 = vmatprep.mubr.bf16.mxu0 0
    %601 = vmatmul.mubr.bf16.gmra.mxu0 %v372
    %v602 = vpop.f32.mrf.mxu0
    %v603 = vadd.f32 0.0, %v602
    %v604 = vpop.f32.mrf.mxu0
    %v605 = vadd.f32 0.0, %v604
    %v606 = vpop.f32.mrf.mxu0
    %v607 = vadd.f32 0.0, %v606
    %v608 = vpop.f32.mrf.mxu0
    %v609 = vadd.f32 0.0, %v608
    %610 = vmatprep.mubr.bf16.mxu0 0
    %611 = vmatmul.mubr.bf16.gmra.mxu0 %v373
    %v612 = vpop.f32.mrf.mxu0
    %v613 = vadd.f32 0.0, %v612
    %v614 = vpop.f32.mrf.mxu0
    %v615 = vadd.f32 0.0, %v614
    %v616 = vpop.f32.mrf.mxu0
    %v617 = vadd.f32 0.0, %v616
    %v618 = vpop.f32.mrf.mxu0
    %v619 = vadd.f32 0.0, %v618
    %620 = vmatprep.mubr.bf16.mxu0 0
    %621 = vmatmul.mubr.bf16.gmra.mxu0 %v374
    %v622 = vpop.f32.mrf.mxu0
    %v623 = vadd.f32 0.0, %v622
    %v624 = vpop.f32.mrf.mxu0
    %v625 = vadd.f32 0.0, %v624
    %v626 = vpop.f32.mrf.mxu0
    %v627 = vadd.f32 0.0, %v626
    %v628 = vpop.f32.mrf.mxu0
    %v629 = vadd.f32 0.0, %v628
    %630 = vmatprep.mubr.bf16.mxu0 0
    %631 = vmatmul.mubr.bf16.gmra.mxu0 %v375
    %v632 = vpop.f32.mrf.mxu0
    %v633 = vadd.f32 0.0, %v632
    %v634 = vpop.f32.mrf.mxu0
    %v635 = vadd.f32 0.0, %v634
    %v636 = vpop.f32.mrf.mxu0
    %v637 = vadd.f32 0.0, %v636
    %v638 = vpop.f32.mrf.mxu0
    %v639 = vadd.f32 0.0, %v638
    %640 = vmatprep.mubr.bf16.mxu0 0
    %641 = vmatmul.mubr.bf16.gmra.mxu0 %v376
    %v642 = vpop.f32.mrf.mxu0
    %v643 = vadd.f32 0.0, %v642
    %v644 = vpop.f32.mrf.mxu0
    %v645 = vadd.f32 0.0, %v644
    %v646 = vpop.f32.mrf.mxu0
    %v647 = vadd.f32 0.0, %v646
    %v648 = vpop.f32.mrf.mxu0
    %v649 = vadd.f32 0.0, %v648
    %650 = vmatprep.mubr.bf16.mxu0 0
    %651 = vmatmul.mubr.bf16.gmra.mxu0 %v377
    %v652 = vpop.f32.mrf.mxu0
    %v653 = vadd.f32 0.0, %v652
    %v654 = vpop.f32.mrf.mxu0
    %v655 = vadd.f32 0.0, %v654
    %v656 = vpop.f32.mrf.mxu0
    %v657 = vadd.f32 0.0, %v656
    %v658 = vpop.f32.mrf.mxu0
    %v659 = vadd.f32 0.0, %v658
    %660 = vmatprep.mubr.bf16.mxu0 0
    %661 = vmatmul.mubr.bf16.gmra.mxu0 %v378
    %v662 = vpop.f32.mrf.mxu0
    %v663 = vadd.f32 0.0, %v662
    %v664 = vpop.f32.mrf.mxu0
    %v665 = vadd.f32 0.0, %v664
    %v666 = vpop.f32.mrf.mxu0
    %v667 = vadd.f32 0.0, %v666
    %v668 = vpop.f32.mrf.mxu0
    %v669 = vadd.f32 0.0, %v668
    %670 = vmatprep.mubr.bf16.mxu0 0
    %671 = vmatmul.mubr.bf16.gmra.mxu0 %v379
    %v672 = vpop.f32.mrf.mxu0
    %v673 = vadd.f32 0.0, %v672
    %v674 = vpop.f32.mrf.mxu0
    %v675 = vadd.f32 0.0, %v674
    %v676 = vpop.f32.mrf.mxu0
    %v677 = vadd.f32 0.0, %v676
    %v678 = vpop.f32.mrf.mxu0
    %v679 = vadd.f32 0.0, %v678
    %680 = vmatprep.mubr.bf16.mxu0 0
    %681 = vmatmul.mubr.bf16.gmra.mxu0 %v380
    %v682 = vpop.f32.mrf.mxu0
    %v683 = vadd.f32 0.0, %v682
    %v684 = vpop.f32.mrf.mxu0
    %v685 = vadd.f32 0.0, %v684
    %v686 = vpop.f32.mrf.mxu0
    %v687 = vadd.f32 0.0, %v686
    %v688 = vpop.f32.mrf.mxu0
    %v689 = vadd.f32 0.0, %v688
    %690 = vmatprep.mubr.bf16.mxu0 0
    %691 = vmatmul.mubr.bf16.gmra.mxu0 %v381
    %v692 = vpop.f32.mrf.mxu0
    %v693 = vadd.f32 0.0, %v692
    %v694 = vpop.f32.mrf.mxu0
    %v695 = vadd.f32 0.0, %v694
    %v696 = vpop.f32.mrf.mxu0
    %v697 = vadd.f32 0.0, %v696
    %v698 = vpop.f32.mrf.mxu0
    %v699 = vadd.f32 0.0, %v698
    %700 = vmatprep.mubr.bf16.mxu0 0
    %701 = vmatmul.mubr.bf16.gmra.mxu0 %v382
    %v702 = vpop.f32.mrf.mxu0
    %v703 = vadd.f32 0.0, %v702
    %v704 = vpop.f32.mrf.mxu0
    %v705 = vadd.f32 0.0, %v704
    %v706 = vpop.f32.mrf.mxu0
    %v707 = vadd.f32 0.0, %v706
    %v708 = vpop.f32.mrf.mxu0
    %v709 = vadd.f32 0.0, %v708
    %710 = vmatprep.mubr.bf16.mxu0 0
    %711 = vmatmul.mubr.bf16.gmra.mxu0 %v383
    %v712 = vpop.f32.mrf.mxu0
    %v713 = vadd.f32 0.0, %v712
    %v714 = vpop.f32.mrf.mxu0
    %v715 = vadd.f32 0.0, %v714
    %v716 = vpop.f32.mrf.mxu0
    %v717 = vadd.f32 0.0, %v716
    %v718 = vpop.f32.mrf.mxu0
    %v719 = vadd.f32 0.0, %v718
    %720 = vdwg.mxu0
    %721 = vmatprep.subr.bf16.mxu0 0
    %722 = vmatpush1.bf16.msra.mxu0 %v503
    %723 = vmatprep.subr.bf16.mxu0 0
    %724 = vmatpush1.bf16.msra.mxu0 %v500
    %725 = vmatprep.subr.bf16.mxu0 0
    %726 = vmatpush1.bf16.msra.mxu0 %v497
    %727 = vmatprep.subr.bf16.mxu0 0
    %728 = vmatpush1.bf16.msra.mxu0 %v494
    %729 = vmatprep.subr.bf16.mxu0 0
    %730 = vmatpush1.bf16.msra.mxu0 %v491
    %731 = vmatprep.subr.bf16.mxu0 0
    %732 = vmatpush1.bf16.msra.mxu0 %v488
    %733 = vmatprep.subr.bf16.mxu0 0
    %734 = vmatpush1.bf16.msra.mxu0 %v485
    %735 = vmatprep.subr.bf16.mxu0 0
    %736 = vmatpush1.bf16.msra.mxu0 %v482
    %737 = vmatprep.subr.bf16.mxu0 0
    %738 = vmatpush2.bf16.msra.mxu0 0
    %739 = vmatprep.subr.bf16.mxu0 0
    %740 = vmatpush2.bf16.msra.mxu0 0
    %741 = vmatprep.subr.bf16.mxu0 0
    %742 = vmatpush2.bf16.msra.mxu0 0
    %743 = vmatprep.subr.bf16.mxu0 0
    %744 = vmatpush2.bf16.msra.mxu0 0
    %745 = vmatprep.subr.bf16.mxu0 0
    %746 = vmatpush2.bf16.msra.mxu0 0
    %747 = vmatprep.subr.bf16.mxu0 0
    %748 = vmatpush2.bf16.msra.mxu0 0
    %749 = vmatprep.subr.bf16.mxu0 0
    %750 = vmatpush2.bf16.msra.mxu0 0
    %751 = vmatprep.subr.bf16.mxu0 0
    %752 = vmatpush2.bf16.msra.mxu0 0
    %753 = vmatprep.mubr.bf16.mxu0 0
    %754 = vmatmul.mubr.bf16.gmra.mxu0 %v368
    %v755 = vpop.f32.mrf.mxu0
    %v756 = vadd.f32 0.0, %v755
    %v757 = vpop.f32.mrf.mxu0
    %v758 = vpop.f32.mrf.mxu0
    %v759 = vadd.f32 0.0, %v758
    %v760 = vpop.f32.mrf.mxu0
    %761 = vmatprep.mubr.bf16.mxu0 0
    %762 = vmatmul.mubr.bf16.gmra.mxu0 %v369
    %v763 = vpop.f32.mrf.mxu0
    %v764 = vadd.f32 0.0, %v763
    %v765 = vpop.f32.mrf.mxu0
    %v766 = vpop.f32.mrf.mxu0
    %v767 = vadd.f32 0.0, %v766
    %v768 = vpop.f32.mrf.mxu0
    %769 = vmatprep.mubr.bf16.mxu0 0
    %770 = vmatmul.mubr.bf16.gmra.mxu0 %v370
    %v771 = vpop.f32.mrf.mxu0
    %v772 = vadd.f32 0.0, %v771
    %v773 = vpop.f32.mrf.mxu0
    %v774 = vpop.f32.mrf.mxu0
    %v775 = vadd.f32 0.0, %v774
    %v776 = vpop.f32.mrf.mxu0
    %777 = vmatprep.mubr.bf16.mxu0 0
    %778 = vmatmul.mubr.bf16.gmra.mxu0 %v371
    %v779 = vpop.f32.mrf.mxu0
    %v780 = vadd.f32 0.0, %v779
    %v781 = vpop.f32.mrf.mxu0
    %v782 = vpop.f32.mrf.mxu0
    %v783 = vadd.f32 0.0, %v782
    %v784 = vpop.f32.mrf.mxu0
    %785 = vmatprep.mubr.bf16.mxu0 0
    %786 = vmatmul.mubr.bf16.gmra.mxu0 %v372
    %v787 = vpop.f32.mrf.mxu0
    %v788 = vadd.f32 0.0, %v787
    %v789 = vpop.f32.mrf.mxu0
    %v790 = vpop.f32.mrf.mxu0
    %v791 = vadd.f32 0.0, %v790
    %v792 = vpop.f32.mrf.mxu0
    %793 = vmatprep.mubr.bf16.mxu0 0
    %794 = vmatmul.mubr.bf16.gmra.mxu0 %v373
    %v795 = vpop.f32.mrf.mxu0
    %v796 = vadd.f32 0.0, %v795
    %v797 = vpop.f32.mrf.mxu0
    %v798 = vpop.f32.mrf.mxu0
    %v799 = vadd.f32 0.0, %v798
    %v800 = vpop.f32.mrf.mxu0
    %801 = vmatprep.mubr.bf16.mxu0 0
    %802 = vmatmul.mubr.bf16.gmra.mxu0 %v374
    %v803 = vpop.f32.mrf.mxu0
    %v804 = vadd.f32 0.0, %v803
    %v805 = vpop.f32.mrf.mxu0
    %v806 = vpop.f32.mrf.mxu0
    %v807 = vadd.f32 0.0, %v806
    %v808 = vpop.f32.mrf.mxu0
    %809 = vmatprep.mubr.bf16.mxu0 0
    %810 = vmatmul.mubr.bf16.gmra.mxu0 %v375
    %v811 = vpop.f32.mrf.mxu0
    %v812 = vadd.f32 0.0, %v811
    %v813 = vpop.f32.mrf.mxu0
    %v814 = vpop.f32.mrf.mxu0
    %v815 = vadd.f32 0.0, %v814
    %v816 = vpop.f32.mrf.mxu0
    %817 = vmatprep.mubr.bf16.mxu0 0
    %818 = vmatmul.mubr.bf16.gmra.mxu0 %v376
    %v819 = vpop.f32.mrf.mxu0
    %v820 = vadd.f32 0.0, %v819
    %v821 = vpop.f32.mrf.mxu0
    %v822 = vpop.f32.mrf.mxu0
    %v823 = vadd.f32 0.0, %v822
    %v824 = vpop.f32.mrf.mxu0
    %825 = vmatprep.mubr.bf16.mxu0 0
    %826 = vmatmul.mubr.bf16.gmra.mxu0 %v377
    %v827 = vpop.f32.mrf.mxu0
    %v828 = vadd.f32 0.0, %v827
    %v829 = vpop.f32.mrf.mxu0
    %v830 = vpop.f32.mrf.mxu0
    %v831 = vadd.f32 0.0, %v830
    %v832 = vpop.f32.mrf.mxu0
    %833 = vmatprep.mubr.bf16.mxu0 0
    %834 = vmatmul.mubr.bf16.gmra.mxu0 %v378
    %v835 = vpop.f32.mrf.mxu0
    %v836 = vadd.f32 0.0, %v835
    %v837 = vpop.f32.mrf.mxu0
    %v838 = vpop.f32.mrf.mxu0
    %v839 = vadd.f32 0.0, %v838
    %v840 = vpop.f32.mrf.mxu0
    %841 = vmatprep.mubr.bf16.mxu0 0
    %842 = vmatmul.mubr.bf16.gmra.mxu0 %v379
    %v843 = vpop.f32.mrf.mxu0
    %v844 = vadd.f32 0.0, %v843
    %v845 = vpop.f32.mrf.mxu0
    %v846 = vpop.f32.mrf.mxu0
    %v847 = vadd.f32 0.0, %v846
    %v848 = vpop.f32.mrf.mxu0
    %849 = vmatprep.mubr.bf16.mxu0 0
    %850 = vmatmul.mubr.bf16.gmra.mxu0 %v380
    %v851 = vpop.f32.mrf.mxu0
    %v852 = vadd.f32 0.0, %v851
    %v853 = vpop.f32.mrf.mxu0
    %v854 = vpop.f32.mrf.mxu0
    %v855 = vadd.f32 0.0, %v854
    %v856 = vpop.f32.mrf.mxu0
    %857 = vmatprep.mubr.bf16.mxu0 0
    %858 = vmatmul.mubr.bf16.gmra.mxu0 %v381
    %v859 = vpop.f32.mrf.mxu0
    %v860 = vadd.f32 0.0, %v859
    %v861 = vpop.f32.mrf.mxu0
    %v862 = vpop.f32.mrf.mxu0
    %v863 = vadd.f32 0.0, %v862
    %v864 = vpop.f32.mrf.mxu0
    %865 = vmatprep.mubr.bf16.mxu0 0
    %866 = vmatmul.mubr.bf16.gmra.mxu0 %v382
    %v867 = vpop.f32.mrf.mxu0
    %v868 = vadd.f32 0.0, %v867
    %v869 = vpop.f32.mrf.mxu0
    %v870 = vpop.f32.mrf.mxu0
    %v871 = vadd.f32 0.0, %v870
    %v872 = vpop.f32.mrf.mxu0
    %873 = vmatprep.mubr.bf16.mxu0 0
    %874 = vmatmul.mubr.bf16.gmra.mxu0 %v383
    %v875 = vpop.f32.mrf.mxu0
    %v876 = vadd.f32 0.0, %v875
    %v877 = vpop.f32.mrf.mxu0
    %v878 = vpop.f32.mrf.mxu0
    %v879 = vadd.f32 0.0, %v878
    %v880 = vpop.f32.mrf.mxu0
    %881 = vdwg.mxu0
    %v882 = vadd.f32 %v144, %v563
    %v883 = vadd.f32 %v145, %v565
    %v884 = vadd.f32 %v146, %v756
    %v885 = vadd.f32 %v147, %v567
    %v886 = vadd.f32 %v148, %v569
    %v887 = vadd.f32 %v149, %v759
    %v888 = vadd.f32 %v150, %v573
    %v889 = vadd.f32 %v151, %v575
    %v890 = vadd.f32 %v152, %v764
    %v891 = vadd.f32 %v153, %v577
    %v892 = vadd.f32 %v154, %v579
    %v893 = vadd.f32 %v155, %v767
    %v894 = vadd.f32 %v156, %v583
    %v895 = vadd.f32 %v157, %v585
    %v896 = vadd.f32 %v158, %v772
    %v897 = vadd.f32 %v159, %v587
    %v898 = vadd.f32 %v160, %v589
    %v899 = vadd.f32 %v161, %v775
    %v900 = vadd.f32 %v162, %v593
    %v901 = vadd.f32 %v163, %v595
    %v902 = vadd.f32 %v164, %v780
    %v903 = vadd.f32 %v165, %v597
    %v904 = vadd.f32 %v166, %v599
    %v905 = vadd.f32 %v167, %v783
    %v906 = vadd.f32 %v168, %v603
    %v907 = vadd.f32 %v169, %v605
    %v908 = vadd.f32 %v170, %v788
    %v909 = vadd.f32 %v171, %v607
    %v910 = vadd.f32 %v172, %v609
    %v911 = vadd.f32 %v173, %v791
    %v912 = vadd.f32 %v174, %v613
    %v913 = vadd.f32 %v175, %v615
    %v914 = vadd.f32 %v176, %v796
    %v915 = vadd.f32 %v177, %v617
    %v916 = vadd.f32 %v178, %v619
    %v917 = vadd.f32 %v179, %v799
    %v918 = vadd.f32 %v180, %v623
    %v919 = vadd.f32 %v181, %v625
    %v920 = vadd.f32 %v182, %v804
    %v921 = vadd.f32 %v183, %v627
    %v922 = vadd.f32 %v184, %v629
    %v923 = vadd.f32 %v185, %v807
    %v924 = vadd.f32 %v186, %v633
    %v925 = vadd.f32 %v187, %v635
    %v926 = vadd.f32 %v188, %v812
    %v927 = vadd.f32 %v189, %v637
    %v928 = vadd.f32 %v190, %v639
    %v929 = vadd.f32 %v191, %v815
    %v930 = vadd.f32 %v192, %v643
    %v931 = vadd.f32 %v193, %v645
    %v932 = vadd.f32 %v194, %v820
    %v933 = vadd.f32 %v195, %v647
    %v934 = vadd.f32 %v196, %v649
    %v935 = vadd.f32 %v197, %v823
    %v936 = vadd.f32 %v198, %v653
    %v937 = vadd.f32 %v199, %v655
    %v938 = vadd.f32 %v200, %v828
    %v939 = vadd.f32 %v201, %v657
    %v940 = vadd.f32 %v202, %v659
    %v941 = vadd.f32 %v203, %v831
    %v942 = vadd.f32 %v204, %v663
    %v943 = vadd.f32 %v205, %v665
    %v944 = vadd.f32 %v206, %v836
    %v945 = vadd.f32 %v207, %v667
    %v946 = vadd.f32 %v208, %v669
    %v947 = vadd.f32 %v209, %v839
    %v948 = vadd.f32 %v210, %v673
    %v949 = vadd.f32 %v211, %v675
    %v950 = vadd.f32 %v212, %v844
    %v951 = vadd.f32 %v213, %v677
    %v952 = vadd.f32 %v214, %v679
    %v953 = vadd.f32 %v215, %v847
    %v954 = vadd.f32 %v216, %v683
    %v955 = vadd.f32 %v217, %v685
    %v956 = vadd.f32 %v218, %v852
    %v957 = vadd.f32 %v219, %v687
    %v958 = vadd.f32 %v220, %v689
    %v959 = vadd.f32 %v221, %v855
    %v960 = vadd.f32 %v222, %v693
    %v961 = vadd.f32 %v223, %v695
    %v962 = vadd.f32 %v224, %v860
    %v963 = vadd.f32 %v225, %v697
    %v964 = vadd.f32 %v226, %v699
    %v965 = vadd.f32 %v227, %v863
    %v966 = vadd.f32 %v228, %v703
    %v967 = vadd.f32 %v229, %v705
    %v968 = vadd.f32 %v230, %v868
    %v969 = vadd.f32 %v231, %v707
    %v970 = vadd.f32 %v232, %v709
    %v971 = vadd.f32 %v233, %v871
    %v972 = vadd.f32 %v234, %v713
    %v973 = vadd.f32 %v235, %v715
    %v974 = vadd.f32 %v236, %v876
    %v975 = vadd.f32 %v237, %v717
    %v976 = vadd.f32 %v238, %v719
    %v977 = vadd.f32 %v239, %v879
    %978 = vst [vmem:[#allocation2] sm:$0xff] %v882
    %979 = vst [vmem:[#allocation2 + $0x8] sm:$0xff] %v883
    %980 = vst [vmem:[#allocation2 + $0x10] sm:$0xff] %v884
    %981 = vst [vmem:[#allocation2 + $0x18] sm:$0xff] %v885
    %982 = vst [vmem:[#allocation2 + $0x20] sm:$0xff] %v886
    %983 = vst [vmem:[#allocation2 + $0x28] sm:$0xff] %v887
    %984 = vst [vmem:[#allocation2 + $0x30] sm:$0xff] %v888
    %985 = vst [vmem:[#allocation2 + $0x38] sm:$0xff] %v889
    %986 = vst [vmem:[#allocation2 + $0x40] sm:$0xff] %v890
    %987 = vst [vmem:[#allocation2 + $0x48] sm:$0xff] %v891
    %988 = vst [vmem:[#allocation2 + $0x50] sm:$0xff] %v892
    %989 = vst [vmem:[#allocation2 + $0x58] sm:$0xff] %v893
    %990 = vst [vmem:[#allocation2 + $0x60] sm:$0xff] %v894
    %991 = vst [vmem:[#allocation2 + $0x68] sm:$0xff] %v895
    %992 = vst [vmem:[#allocation2 + $0x70] sm:$0xff] %v896
    %993 = vst [vmem:[#allocation2 + $0x78] sm:$0xff] %v897
    %994 = vst [vmem:[#allocation2 + $0x80] sm:$0xff] %v898
    %995 = vst [vmem:[#allocation2 + $0x88] sm:$0xff] %v899
    %996 = vst [vmem:[#allocation2 + $0x90] sm:$0xff] %v900
    %997 = vst [vmem:[#allocation2 + $0x98] sm:$0xff] %v901
    %998 = vst [vmem:[#allocation2 + $0xa0] sm:$0xff] %v902
    %999 = vst [vmem:[#allocation2 + $0xa8] sm:$0xff] %v903
    %1000 = vst [vmem:[#allocation2 + $0xb0] sm:$0xff] %v904
    %1001 = vst [vmem:[#allocation2 + $0xb8] sm:$0xff] %v905
    %1002 = vst [vmem:[#allocation2 + $0xc0] sm:$0xff] %v906
    %1003 = vst [vmem:[#allocation2 + $0xc8] sm:$0xff] %v907
    %1004 = vst [vmem:[#allocation2 + $0xd0] sm:$0xff] %v908
    %1005 = vst [vmem:[#allocation2 + $0xd8] sm:$0xff] %v909
    %1006 = vst [vmem:[#allocation2 + $0xe0] sm:$0xff] %v910
    %1007 = vst [vmem:[#allocation2 + $0xe8] sm:$0xff] %v911
    %1008 = vst [vmem:[#allocation2 + $0xf0] sm:$0xff] %v912
    %1009 = vst [vmem:[#allocation2 + $0xf8] sm:$0xff] %v913
    %1010 = vst [vmem:[#allocation2 + $0x100] sm:$0xff] %v914
    %1011 = vst [vmem:[#allocation2 + $0x108] sm:$0xff] %v915
    %1012 = vst [vmem:[#allocation2 + $0x110] sm:$0xff] %v916
    %1013 = vst [vmem:[#allocation2 + $0x118] sm:$0xff] %v917
    %1014 = vst [vmem:[#allocation2 + $0x120] sm:$0xff] %v918
    %1015 = vst [vmem:[#allocation2 + $0x128] sm:$0xff] %v919
    %1016 = vst [vmem:[#allocation2 + $0x130] sm:$0xff] %v920
    %1017 = vst [vmem:[#allocation2 + $0x138] sm:$0xff] %v921
    %1018 = vst [vmem:[#allocation2 + $0x140] sm:$0xff] %v922
    %1019 = vst [vmem:[#allocation2 + $0x148] sm:$0xff] %v923
    %1020 = vst [vmem:[#allocation2 + $0x150] sm:$0xff] %v924
    %1021 = vst [vmem:[#allocation2 + $0x158] sm:$0xff] %v925
    %1022 = vst [vmem:[#allocation2 + $0x160] sm:$0xff] %v926
    %1023 = vst [vmem:[#allocation2 + $0x168] sm:$0xff] %v927
    %1024 = vst [vmem:[#allocation2 + $0x170] sm:$0xff] %v928
    %1025 = vst [vmem:[#allocation2 + $0x178] sm:$0xff] %v929
    %1026 = vst [vmem:[#allocation2 + $0x180] sm:$0xff] %v930
    %1027 = vst [vmem:[#allocation2 + $0x188] sm:$0xff] %v931
    %1028 = vst [vmem:[#allocation2 + $0x190] sm:$0xff] %v932
    %1029 = vst [vmem:[#allocation2 + $0x198] sm:$0xff] %v933
    %1030 = vst [vmem:[#allocation2 + $0x1a0] sm:$0xff] %v934
    %1031 = vst [vmem:[#allocation2 + $0x1a8] sm:$0xff] %v935
    %1032 = vst [vmem:[#allocation2 + $0x1b0] sm:$0xff] %v936
    %1033 = vst [vmem:[#allocation2 + $0x1b8] sm:$0xff] %v937
    %1034 = vst [vmem:[#allocation2 + $0x1c0] sm:$0xff] %v938
    %1035 = vst [vmem:[#allocation2 + $0x1c8] sm:$0xff] %v939
    %1036 = vst [vmem:[#allocation2 + $0x1d0] sm:$0xff] %v940
    %1037 = vst [vmem:[#allocation2 + $0x1d8] sm:$0xff] %v941
    %1038 = vst [vmem:[#allocation2 + $0x1e0] sm:$0xff] %v942
    %1039 = vst [vmem:[#allocation2 + $0x1e8] sm:$0xff] %v943
    %1040 = vst [vmem:[#allocation2 + $0x1f0] sm:$0xff] %v944
    %1041 = vst [vmem:[#allocation2 + $0x1f8] sm:$0xff] %v945
    %1042 = vst [vmem:[#allocation2 + $0x200] sm:$0xff] %v946
    %1043 = vst [vmem:[#allocation2 + $0x208] sm:$0xff] %v947
    %1044 = vst [vmem:[#allocation2 + $0x210] sm:$0xff] %v948
    %1045 = vst [vmem:[#allocation2 + $0x218] sm:$0xff] %v949
    %1046 = vst [vmem:[#allocation2 + $0x220] sm:$0xff] %v950
    %1047 = vst [vmem:[#allocation2 + $0x228] sm:$0xff] %v951
    %1048 = vst [vmem:[#allocation2 + $0x230] sm:$0xff] %v952
    %1049 = vst [vmem:[#allocation2 + $0x238] sm:$0xff] %v953
    %1050 = vst [vmem:[#allocation2 + $0x240] sm:$0xff] %v954
    %1051 = vst [vmem:[#allocation2 + $0x248] sm:$0xff] %v955
    %1052 = vst [vmem:[#allocation2 + $0x250] sm:$0xff] %v956
    %1053 = vst [vmem:[#allocation2 + $0x258] sm:$0xff] %v957
    %1054 = vst [vmem:[#allocation2 + $0x260] sm:$0xff] %v958
    %1055 = vst [vmem:[#allocation2 + $0x268] sm:$0xff] %v959
    %1056 = vst [vmem:[#allocation2 + $0x270] sm:$0xff] %v960
    %1057 = vst [vmem:[#allocation2 + $0x278] sm:$0xff] %v961
    %1058 = vst [vmem:[#allocation2 + $0x280] sm:$0xff] %v962
    %1059 = vst [vmem:[#allocation2 + $0x288] sm:$0xff] %v963
    %1060 = vst [vmem:[#allocation2 + $0x290] sm:$0xff] %v964
    %1061 = vst [vmem:[#allocation2 + $0x298] sm:$0xff] %v965
    %1062 = vst [vmem:[#allocation2 + $0x2a0] sm:$0xff] %v966
    %1063 = vst [vmem:[#allocation2 + $0x2a8] sm:$0xff] %v967
    %1064 = vst [vmem:[#allocation2 + $0x2b0] sm:$0xff] %v968
    %1065 = vst [vmem:[#allocation2 + $0x2b8] sm:$0xff] %v969
    %1066 = vst [vmem:[#allocation2 + $0x2c0] sm:$0xff] %v970
    %1067 = vst [vmem:[#allocation2 + $0x2c8] sm:$0xff] %v971
    %1068 = vst [vmem:[#allocation2 + $0x2d0] sm:$0xff] %v972
    %1069 = vst [vmem:[#allocation2 + $0x2d8] sm:$0xff] %v973
    %1070 = vst [vmem:[#allocation2 + $0x2e0] sm:$0xff] %v974
    %1071 = vst [vmem:[#allocation2 + $0x2e8] sm:$0xff] %v975
    %1072 = vst [vmem:[#allocation2 + $0x2f0] sm:$0xff] %v976
    %1073 = vst [vmem:[#allocation2 + $0x2f8] sm:$0xff] %v977
    // Predicated region
    $region26: #{tpu_custom_call.1} parent=1 // pred_check
      %p1074 = pneg %p44
    $region27: #{tpu_custom_call.1} parent=1 // pred_check_branch
      %1076 = sbr.rel (%p1074) target = $region29
    $region28: #{tpu_custom_call.1} parent=1 // pred_region
      %v1077 = vld [vmem:[#allocation2] sm:$0xff]
      %v1078 = vld [vmem:[#allocation2 + $0x8] sm:$0xff]
      %v1079 = vld [vmem:[#allocation2 + $0x10] sm:$0xff]
      %v1080 = vld [vmem:[#allocation2 + $0x18] sm:$0xff]
      %v1081 = vld [vmem:[#allocation2 + $0x20] sm:$0xff]
      %v1082 = vld [vmem:[#allocation2 + $0x28] sm:$0xff]
      %v1083 = vld [vmem:[#allocation2 + $0x30] sm:$0xff]
      %v1084 = vld [vmem:[#allocation2 + $0x38] sm:$0xff]
      %v1085 = vld [vmem:[#allocation2 + $0x40] sm:$0xff]
      %v1086 = vld [vmem:[#allocation2 + $0x48] sm:$0xff]
      %v1087 = vld [vmem:[#allocation2 + $0x50] sm:$0xff]
      %v1088 = vld [vmem:[#allocation2 + $0x58] sm:$0xff]
      %v1089 = vld [vmem:[#allocation2 + $0x60] sm:$0xff]
      %v1090 = vld [vmem:[#allocation2 + $0x68] sm:$0xff]
      %v1091 = vld [vmem:[#allocation2 + $0x70] sm:$0xff]
      %v1092 = vld [vmem:[#allocation2 + $0x78] sm:$0xff]
      %v1093 = vld [vmem:[#allocation2 + $0x80] sm:$0xff]
      %v1094 = vld [vmem:[#allocation2 + $0x88] sm:$0xff]
      %v1095 = vld [vmem:[#allocation2 + $0x90] sm:$0xff]
      %v1096 = vld [vmem:[#allocation2 + $0x98] sm:$0xff]
      %v1097 = vld [vmem:[#allocation2 + $0xa0] sm:$0xff]
      %v1098 = vld [vmem:[#allocation2 + $0xa8] sm:$0xff]
      %v1099 = vld [vmem:[#allocation2 + $0xb0] sm:$0xff]
      %v1100 = vld [vmem:[#allocation2 + $0xb8] sm:$0xff]
      %v1101 = vld [vmem:[#allocation2 + $0xc0] sm:$0xff]
      %v1102 = vld [vmem:[#allocation2 + $0xc8] sm:$0xff]
      %v1103 = vld [vmem:[#allocation2 + $0xd0] sm:$0xff]
      %v1104 = vld [vmem:[#allocation2 + $0xd8] sm:$0xff]
      %v1105 = vld [vmem:[#allocation2 + $0xe0] sm:$0xff]
      %v1106 = vld [vmem:[#allocation2 + $0xe8] sm:$0xff]
      %v1107 = vld [vmem:[#allocation2 + $0xf0] sm:$0xff]
      %v1108 = vld [vmem:[#allocation2 + $0xf8] sm:$0xff]
      %v1109 = vld [vmem:[#allocation2 + $0x100] sm:$0xff]
      %v1110 = vld [vmem:[#allocation2 + $0x108] sm:$0xff]
      %v1111 = vld [vmem:[#allocation2 + $0x110] sm:$0xff]
      %v1112 = vld [vmem:[#allocation2 + $0x118] sm:$0xff]
      %v1113 = vld [vmem:[#allocation2 + $0x120] sm:$0xff]
      %v1114 = vld [vmem:[#allocation2 + $0x128] sm:$0xff]
      %v1115 = vld [vmem:[#allocation2 + $0x130] sm:$0xff]
      %v1116 = vld [vmem:[#allocation2 + $0x138] sm:$0xff]
      %v1117 = vld [vmem:[#allocation2 + $0x140] sm:$0xff]
      %v1118 = vld [vmem:[#allocation2 + $0x148] sm:$0xff]
      %v1119 = vld [vmem:[#allocation2 + $0x150] sm:$0xff]
      %v1120 = vld [vmem:[#allocation2 + $0x158] sm:$0xff]
      %v1121 = vld [vmem:[#allocation2 + $0x160] sm:$0xff]
      %v1122 = vld [vmem:[#allocation2 + $0x168] sm:$0xff]
      %v1123 = vld [vmem:[#allocation2 + $0x170] sm:$0xff]
      %v1124 = vld [vmem:[#allocation2 + $0x178] sm:$0xff]
      %v1125 = vld [vmem:[#allocation2 + $0x180] sm:$0xff]
      %v1126 = vld [vmem:[#allocation2 + $0x188] sm:$0xff]
      %v1127 = vld [vmem:[#allocation2 + $0x190] sm:$0xff]
      %v1128 = vld [vmem:[#allocation2 + $0x198] sm:$0xff]
      %v1129 = vld [vmem:[#allocation2 + $0x1a0] sm:$0xff]
      %v1130 = vld [vmem:[#allocation2 + $0x1a8] sm:$0xff]
      %v1131 = vld [vmem:[#allocation2 + $0x1b0] sm:$0xff]
      %v1132 = vld [vmem:[#allocation2 + $0x1b8] sm:$0xff]
      %v1133 = vld [vmem:[#allocation2 + $0x1c0] sm:$0xff]
      %v1134 = vld [vmem:[#allocation2 + $0x1c8] sm:$0xff]
      %v1135 = vld [vmem:[#allocation2 + $0x1d0] sm:$0xff]
      %v1136 = vld [vmem:[#allocation2 + $0x1d8] sm:$0xff]
      %v1137 = vld [vmem:[#allocation2 + $0x1e0] sm:$0xff]
      %v1138 = vld [vmem:[#allocation2 + $0x1e8] sm:$0xff]
      %v1139 = vld [vmem:[#allocation2 + $0x1f0] sm:$0xff]
      %v1140 = vld [vmem:[#allocation2 + $0x1f8] sm:$0xff]
      %v1141 = vld [vmem:[#allocation2 + $0x200] sm:$0xff]
      %v1142 = vld [vmem:[#allocation2 + $0x208] sm:$0xff]
      %v1143 = vld [vmem:[#allocation2 + $0x210] sm:$0xff]
      %v1144 = vld [vmem:[#allocation2 + $0x218] sm:$0xff]
      %v1145 = vld [vmem:[#allocation2 + $0x220] sm:$0xff]
      %v1146 = vld [vmem:[#allocation2 + $0x228] sm:$0xff]
      %v1147 = vld [vmem:[#allocation2 + $0x230] sm:$0xff]
      %v1148 = vld [vmem:[#allocation2 + $0x238] sm:$0xff]
      %v1149 = vld [vmem:[#allocation2 + $0x240] sm:$0xff]
      %v1150 = vld [vmem:[#allocation2 + $0x248] sm:$0xff]
      %v1151 = vld [vmem:[#allocation2 + $0x250] sm:$0xff]
      %v1152 = vld [vmem:[#allocation2 + $0x258] sm:$0xff]
      %v1153 = vld [vmem:[#allocation2 + $0x260] sm:$0xff]
      %v1154 = vld [vmem:[#allocation2 + $0x268] sm:$0xff]
      %v1155 = vld [vmem:[#allocation2 + $0x270] sm:$0xff]
      %v1156 = vld [vmem:[#allocation2 + $0x278] sm:$0xff]
      %v1157 = vld [vmem:[#allocation2 + $0x280] sm:$0xff]
      %v1158 = vld [vmem:[#allocation2 + $0x288] sm:$0xff]
      %v1159 = vld [vmem:[#allocation2 + $0x290] sm:$0xff]
      %v1160 = vld [vmem:[#allocation2 + $0x298] sm:$0xff]
      %v1161 = vld [vmem:[#allocation2 + $0x2a0] sm:$0xff]
      %v1162 = vld [vmem:[#allocation2 + $0x2a8] sm:$0xff]
      %v1163 = vld [vmem:[#allocation2 + $0x2b0] sm:$0xff]
      %v1164 = vld [vmem:[#allocation2 + $0x2b8] sm:$0xff]
      %v1165 = vld [vmem:[#allocation2 + $0x2c0] sm:$0xff]
      %v1166 = vld [vmem:[#allocation2 + $0x2c8] sm:$0xff]
      %v1167 = vld [vmem:[#allocation2 + $0x2d0] sm:$0xff]
      %v1168 = vld [vmem:[#allocation2 + $0x2d8] sm:$0xff]
      %v1169 = vld [vmem:[#allocation2 + $0x2e0] sm:$0xff]
      %v1170 = vld [vmem:[#allocation2 + $0x2e8] sm:$0xff]
      %v1171 = vld [vmem:[#allocation2 + $0x2f0] sm:$0xff]
      %v1172 = vld [vmem:[#allocation2 + $0x2f8] sm:$0xff]
      %v1173 = vld [vmem:[%s2] sm:$0x7]
      %v1174 = vunpack.c.l.bf16 %v1173
      %v1176 = vlaneseq
      %v1177 = vshrl.u32 %v1176, 7
      %v1178 = vsub.s32 0, %v1177
      %v1179 = vrot.slane %v1174, %v1178
      %v1180 = vlaneseq
      %v1181 = vshrl.u32 %v1180, 7
      %v1182 = vsub.s32 2, %v1181
      %v1183 = vrot.slane %v1174, %v1182
      %v1184 = vlaneseq
      %v1185 = vshrl.u32 %v1184, 7
      %v1186 = vsub.s32 4, %v1185
      %v1187 = vrot.slane %v1174, %v1186
      %v1191 = vlaneseq
      %v1192 = vshrl.u32 %v1191, 7
      %v1193 = vsub.s32 0, %v1192
      %v1194 = vrot.slane %v1179, %v1193
      %v1195 = vlaneseq
      %v1196 = vshrl.u32 %v1195, 7
      %v1197 = vsub.s32 0, %v1196
      %v1198 = vrot.slane %v1183, %v1197
      %v1199 = vlaneseq
      %v1200 = vshrl.u32 %v1199, 7
      %v1201 = vsub.s32 0, %v1200
      %v1202 = vrot.slane %v1187, %v1201
      %v1203 = vadd.f32 %v1077, %v1194
      %v1204 = vadd.f32 %v1078, %v1198
      %v1205 = vadd.f32 %v1079, %v1202
      %v1206 = vadd.f32 %v1080, %v1194
      %v1207 = vadd.f32 %v1081, %v1198
      %v1208 = vadd.f32 %v1082, %v1202
      %v1209 = vadd.f32 %v1083, %v1194
      %v1210 = vadd.f32 %v1084, %v1198
      %v1211 = vadd.f32 %v1085, %v1202
      %v1212 = vadd.f32 %v1086, %v1194
      %v1213 = vadd.f32 %v1087, %v1198
      %v1214 = vadd.f32 %v1088, %v1202
      %v1215 = vadd.f32 %v1089, %v1194
      %v1216 = vadd.f32 %v1090, %v1198
      %v1217 = vadd.f32 %v1091, %v1202
      %v1218 = vadd.f32 %v1092, %v1194
      %v1219 = vadd.f32 %v1093, %v1198
      %v1220 = vadd.f32 %v1094, %v1202
      %v1221 = vadd.f32 %v1095, %v1194
      %v1222 = vadd.f32 %v1096, %v1198
      %v1223 = vadd.f32 %v1097, %v1202
      %v1224 = vadd.f32 %v1098, %v1194
      %v1225 = vadd.f32 %v1099, %v1198
      %v1226 = vadd.f32 %v1100, %v1202
      %v1227 = vadd.f32 %v1101, %v1194
      %v1228 = vadd.f32 %v1102, %v1198
      %v1229 = vadd.f32 %v1103, %v1202
      %v1230 = vadd.f32 %v1104, %v1194
      %v1231 = vadd.f32 %v1105, %v1198
      %v1232 = vadd.f32 %v1106, %v1202
      %v1233 = vadd.f32 %v1107, %v1194
      %v1234 = vadd.f32 %v1108, %v1198
      %v1235 = vadd.f32 %v1109, %v1202
      %v1236 = vadd.f32 %v1110, %v1194
      %v1237 = vadd.f32 %v1111, %v1198
      %v1238 = vadd.f32 %v1112, %v1202
      %v1239 = vadd.f32 %v1113, %v1194
      %v1240 = vadd.f32 %v1114, %v1198
      %v1241 = vadd.f32 %v1115, %v1202
      %v1242 = vadd.f32 %v1116, %v1194
      %v1243 = vadd.f32 %v1117, %v1198
      %v1244 = vadd.f32 %v1118, %v1202
      %v1245 = vadd.f32 %v1119, %v1194
      %v1246 = vadd.f32 %v1120, %v1198
      %v1247 = vadd.f32 %v1121, %v1202
      %v1248 = vadd.f32 %v1122, %v1194
      %v1249 = vadd.f32 %v1123, %v1198
      %v1250 = vadd.f32 %v1124, %v1202
      %v1251 = vadd.f32 %v1125, %v1194
      %v1252 = vadd.f32 %v1126, %v1198
      %v1253 = vadd.f32 %v1127, %v1202
      %v1254 = vadd.f32 %v1128, %v1194
      %v1255 = vadd.f32 %v1129, %v1198
      %v1256 = vadd.f32 %v1130, %v1202
      %v1257 = vadd.f32 %v1131, %v1194
      %v1258 = vadd.f32 %v1132, %v1198
      %v1259 = vadd.f32 %v1133, %v1202
      %v1260 = vadd.f32 %v1134, %v1194
      %v1261 = vadd.f32 %v1135, %v1198
      %v1262 = vadd.f32 %v1136, %v1202
      %v1263 = vadd.f32 %v1137, %v1194
      %v1264 = vadd.f32 %v1138, %v1198
      %v1265 = vadd.f32 %v1139, %v1202
      %v1266 = vadd.f32 %v1140, %v1194
      %v1267 = vadd.f32 %v1141, %v1198
      %v1268 = vadd.f32 %v1142, %v1202
      %v1269 = vadd.f32 %v1143, %v1194
      %v1270 = vadd.f32 %v1144, %v1198
      %v1271 = vadd.f32 %v1145, %v1202
      %v1272 = vadd.f32 %v1146, %v1194
      %v1273 = vadd.f32 %v1147, %v1198
      %v1274 = vadd.f32 %v1148, %v1202
      %v1275 = vadd.f32 %v1149, %v1194
      %v1276 = vadd.f32 %v1150, %v1198
      %v1277 = vadd.f32 %v1151, %v1202
      %v1278 = vadd.f32 %v1152, %v1194
      %v1279 = vadd.f32 %v1153, %v1198
      %v1280 = vadd.f32 %v1154, %v1202
      %v1281 = vadd.f32 %v1155, %v1194
      %v1282 = vadd.f32 %v1156, %v1198
      %v1283 = vadd.f32 %v1157, %v1202
      %v1284 = vadd.f32 %v1158, %v1194
      %v1285 = vadd.f32 %v1159, %v1198
      %v1286 = vadd.f32 %v1160, %v1202
      %v1287 = vadd.f32 %v1161, %v1194
      %v1288 = vadd.f32 %v1162, %v1198
      %v1289 = vadd.f32 %v1163, %v1202
      %v1290 = vadd.f32 %v1164, %v1194
      %v1291 = vadd.f32 %v1165, %v1198
      %v1292 = vadd.f32 %v1166, %v1202
      %v1293 = vadd.f32 %v1167, %v1194
      %v1294 = vadd.f32 %v1168, %v1198
      %v1295 = vadd.f32 %v1169, %v1202
      %v1296 = vadd.f32 %v1170, %v1194
      %v1297 = vadd.f32 %v1171, %v1198
      %v1298 = vadd.f32 %v1172, %v1202
      %v1299 = vpack.c.bf16 %v1206, %v1203
      %v1300 = vpack.c.bf16 %v1207, %v1204
      %v1301 = vpack.c.bf16 %v1208, %v1205
      %v1302 = vpack.c.bf16 %v1212, %v1209
      %v1303 = vpack.c.bf16 %v1213, %v1210
      %v1304 = vpack.c.bf16 %v1214, %v1211
      %v1305 = vpack.c.bf16 %v1218, %v1215
      %v1306 = vpack.c.bf16 %v1219, %v1216
      %v1307 = vpack.c.bf16 %v1220, %v1217
      %v1308 = vpack.c.bf16 %v1224, %v1221
      %v1309 = vpack.c.bf16 %v1225, %v1222
      %v1310 = vpack.c.bf16 %v1226, %v1223
      %v1311 = vpack.c.bf16 %v1230, %v1227
      %v1312 = vpack.c.bf16 %v1231, %v1228
      %v1313 = vpack.c.bf16 %v1232, %v1229
      %v1314 = vpack.c.bf16 %v1236, %v1233
      %v1315 = vpack.c.bf16 %v1237, %v1234
      %v1316 = vpack.c.bf16 %v1238, %v1235
      %v1317 = vpack.c.bf16 %v1242, %v1239
      %v1318 = vpack.c.bf16 %v1243, %v1240
      %v1319 = vpack.c.bf16 %v1244, %v1241
      %v1320 = vpack.c.bf16 %v1248, %v1245
      %v1321 = vpack.c.bf16 %v1249, %v1246
      %v1322 = vpack.c.bf16 %v1250, %v1247
      %v1323 = vpack.c.bf16 %v1254, %v1251
      %v1324 = vpack.c.bf16 %v1255, %v1252
      %v1325 = vpack.c.bf16 %v1256, %v1253
      %v1326 = vpack.c.bf16 %v1260, %v1257
      %v1327 = vpack.c.bf16 %v1261, %v1258
      %v1328 = vpack.c.bf16 %v1262, %v1259
      %v1329 = vpack.c.bf16 %v1266, %v1263
      %v1330 = vpack.c.bf16 %v1267, %v1264
      %v1331 = vpack.c.bf16 %v1268, %v1265
      %v1332 = vpack.c.bf16 %v1272, %v1269
      %v1333 = vpack.c.bf16 %v1273, %v1270
      %v1334 = vpack.c.bf16 %v1274, %v1271
      %v1335 = vpack.c.bf16 %v1278, %v1275
      %v1336 = vpack.c.bf16 %v1279, %v1276
      %v1337 = vpack.c.bf16 %v1280, %v1277
      %v1338 = vpack.c.bf16 %v1284, %v1281
      %v1339 = vpack.c.bf16 %v1285, %v1282
      %v1340 = vpack.c.bf16 %v1286, %v1283
      %v1341 = vpack.c.bf16 %v1290, %v1287
      %v1342 = vpack.c.bf16 %v1291, %v1288
      %v1343 = vpack.c.bf16 %v1292, %v1289
      %v1344 = vpack.c.bf16 %v1296, %v1293
      %v1345 = vpack.c.bf16 %v1297, %v1294
      %v1346 = vpack.c.bf16 %v1298, %v1295
      %v1395 = vunpack.c.l.b16 %v1299
      %v1396 = vunpack.c.l.b16 %v1300
      %v1397 = vunpack.c.l.b16 %v1301
      %v1398 = vunpack.c.h.b16 %v1299
      %v1399 = vunpack.c.h.b16 %v1300
      %v1400 = vunpack.c.h.b16 %v1301
      %v1401 = vunpack.c.l.b16 %v1302
      %v1402 = vunpack.c.l.b16 %v1303
      %v1403 = vunpack.c.l.b16 %v1304
      %v1404 = vunpack.c.h.b16 %v1302
      %v1405 = vunpack.c.h.b16 %v1303
      %v1406 = vunpack.c.h.b16 %v1304
      %v1407 = vunpack.c.l.b16 %v1305
      %v1408 = vunpack.c.l.b16 %v1306
      %v1409 = vunpack.c.l.b16 %v1307
      %v1410 = vunpack.c.h.b16 %v1305
      %v1411 = vunpack.c.h.b16 %v1306
      %v1412 = vunpack.c.h.b16 %v1307
      %v1413 = vunpack.c.l.b16 %v1308
      %v1414 = vunpack.c.l.b16 %v1309
      %v1415 = vunpack.c.l.b16 %v1310
      %v1416 = vunpack.c.h.b16 %v1308
      %v1417 = vunpack.c.h.b16 %v1309
      %v1418 = vunpack.c.h.b16 %v1310
      %v1419 = vunpack.c.l.b16 %v1311
      %v1420 = vunpack.c.l.b16 %v1312
      %v1421 = vunpack.c.l.b16 %v1313
      %v1422 = vunpack.c.h.b16 %v1311
      %v1423 = vunpack.c.h.b16 %v1312
      %v1424 = vunpack.c.h.b16 %v1313
      %v1425 = vunpack.c.l.b16 %v1314
      %v1426 = vunpack.c.l.b16 %v1315
      %v1427 = vunpack.c.l.b16 %v1316
      %v1428 = vunpack.c.h.b16 %v1314
      %v1429 = vunpack.c.h.b16 %v1315
      %v1430 = vunpack.c.h.b16 %v1316
      %v1431 = vunpack.c.l.b16 %v1317
      %v1432 = vunpack.c.l.b16 %v1318
      %v1433 = vunpack.c.l.b16 %v1319
      %v1434 = vunpack.c.h.b16 %v1317
      %v1435 = vunpack.c.h.b16 %v1318
      %v1436 = vunpack.c.h.b16 %v1319
      %v1437 = vunpack.c.l.b16 %v1320
      %v1438 = vunpack.c.l.b16 %v1321
      %v1439 = vunpack.c.l.b16 %v1322
      %v1440 = vunpack.c.h.b16 %v1320
      %v1441 = vunpack.c.h.b16 %v1321
      %v1442 = vunpack.c.h.b16 %v1322
      %v1443 = vunpack.c.l.b16 %v1323
      %v1444 = vunpack.c.l.b16 %v1324
      %v1445 = vunpack.c.l.b16 %v1325
      %v1446 = vunpack.c.h.b16 %v1323
      %v1447 = vunpack.c.h.b16 %v1324
      %v1448 = vunpack.c.h.b16 %v1325
      %v1449 = vunpack.c.l.b16 %v1326
      %v1450 = vunpack.c.l.b16 %v1327
      %v1451 = vunpack.c.l.b16 %v1328
      %v1452 = vunpack.c.h.b16 %v1326
      %v1453 = vunpack.c.h.b16 %v1327
      %v1454 = vunpack.c.h.b16 %v1328
      %v1455 = vunpack.c.l.b16 %v1329
      %v1456 = vunpack.c.l.b16 %v1330
      %v1457 = vunpack.c.l.b16 %v1331
      %v1458 = vunpack.c.h.b16 %v1329
      %v1459 = vunpack.c.h.b16 %v1330
      %v1460 = vunpack.c.h.b16 %v1331
      %v1461 = vunpack.c.l.b16 %v1332
      %v1462 = vunpack.c.l.b16 %v1333
      %v1463 = vunpack.c.l.b16 %v1334
      %v1464 = vunpack.c.h.b16 %v1332
      %v1465 = vunpack.c.h.b16 %v1333
      %v1466 = vunpack.c.h.b16 %v1334
      %v1467 = vunpack.c.l.b16 %v1335
      %v1468 = vunpack.c.l.b16 %v1336
      %v1469 = vunpack.c.l.b16 %v1337
      %v1470 = vunpack.c.h.b16 %v1335
      %v1471 = vunpack.c.h.b16 %v1336
      %v1472 = vunpack.c.h.b16 %v1337
      %v1473 = vunpack.c.l.b16 %v1338
      %v1474 = vunpack.c.l.b16 %v1339
      %v1475 = vunpack.c.l.b16 %v1340
      %v1476 = vunpack.c.h.b16 %v1338
      %v1477 = vunpack.c.h.b16 %v1339
      %v1478 = vunpack.c.h.b16 %v1340
      %v1479 = vunpack.c.l.b16 %v1341
      %v1480 = vunpack.c.l.b16 %v1342
      %v1481 = vunpack.c.l.b16 %v1343
      %v1482 = vunpack.c.h.b16 %v1341
      %v1483 = vunpack.c.h.b16 %v1342
      %v1484 = vunpack.c.h.b16 %v1343
      %v1485 = vunpack.c.l.b16 %v1344
      %v1486 = vunpack.c.l.b16 %v1345
      %v1487 = vunpack.c.l.b16 %v1346
      %v1488 = vunpack.c.h.b16 %v1344
      %v1489 = vunpack.c.h.b16 %v1345
      %v1490 = vunpack.c.h.b16 %v1346
      %v1491 = vpack.c.b16 %v1396, %v1395
      %v1492 = vpack.c.b16 %v1397, %v1397
      %v1493 = vpack.c.b16 %v1399, %v1398
      %v1494 = vpack.c.b16 %v1400, %v1400
      %v1495 = vpack.c.b16 %v1402, %v1401
      %v1496 = vpack.c.b16 %v1403, %v1403
      %v1497 = vpack.c.b16 %v1405, %v1404
      %v1498 = vpack.c.b16 %v1406, %v1406
      %v1499 = vpack.c.b16 %v1408, %v1407
      %v1500 = vpack.c.b16 %v1409, %v1409
      %v1501 = vpack.c.b16 %v1411, %v1410
      %v1502 = vpack.c.b16 %v1412, %v1412
      %v1503 = vpack.c.b16 %v1414, %v1413
      %v1504 = vpack.c.b16 %v1415, %v1415
      %v1505 = vpack.c.b16 %v1417, %v1416
      %v1506 = vpack.c.b16 %v1418, %v1418
      %v1507 = vpack.c.b16 %v1420, %v1419
      %v1508 = vpack.c.b16 %v1421, %v1421
      %v1509 = vpack.c.b16 %v1423, %v1422
      %v1510 = vpack.c.b16 %v1424, %v1424
      %v1511 = vpack.c.b16 %v1426, %v1425
      %v1512 = vpack.c.b16 %v1427, %v1427
      %v1513 = vpack.c.b16 %v1429, %v1428
      %v1514 = vpack.c.b16 %v1430, %v1430
      %v1515 = vpack.c.b16 %v1432, %v1431
      %v1516 = vpack.c.b16 %v1433, %v1433
      %v1517 = vpack.c.b16 %v1435, %v1434
      %v1518 = vpack.c.b16 %v1436, %v1436
      %v1519 = vpack.c.b16 %v1438, %v1437
      %v1520 = vpack.c.b16 %v1439, %v1439
      %v1521 = vpack.c.b16 %v1441, %v1440
      %v1522 = vpack.c.b16 %v1442, %v1442
      %v1523 = vpack.c.b16 %v1444, %v1443
      %v1524 = vpack.c.b16 %v1445, %v1445
      %v1525 = vpack.c.b16 %v1447, %v1446
      %v1526 = vpack.c.b16 %v1448, %v1448
      %v1527 = vpack.c.b16 %v1450, %v1449
      %v1528 = vpack.c.b16 %v1451, %v1451
      %v1529 = vpack.c.b16 %v1453, %v1452
      %v1530 = vpack.c.b16 %v1454, %v1454
      %v1531 = vpack.c.b16 %v1456, %v1455
      %v1532 = vpack.c.b16 %v1457, %v1457
      %v1533 = vpack.c.b16 %v1459, %v1458
      %v1534 = vpack.c.b16 %v1460, %v1460
      %v1535 = vpack.c.b16 %v1462, %v1461
      %v1536 = vpack.c.b16 %v1463, %v1463
      %v1537 = vpack.c.b16 %v1465, %v1464
      %v1538 = vpack.c.b16 %v1466, %v1466
      %v1539 = vpack.c.b16 %v1468, %v1467
      %v1540 = vpack.c.b16 %v1469, %v1469
      %v1541 = vpack.c.b16 %v1471, %v1470
      %v1542 = vpack.c.b16 %v1472, %v1472
      %v1543 = vpack.c.b16 %v1474, %v1473
      %v1544 = vpack.c.b16 %v1475, %v1475
      %v1545 = vpack.c.b16 %v1477, %v1476
      %v1546 = vpack.c.b16 %v1478, %v1478
      %v1547 = vpack.c.b16 %v1480, %v1479
      %v1548 = vpack.c.b16 %v1481, %v1481
      %v1549 = vpack.c.b16 %v1483, %v1482
      %v1550 = vpack.c.b16 %v1484, %v1484
      %v1551 = vpack.c.b16 %v1486, %v1485
      %v1552 = vpack.c.b16 %v1487, %v1487
      %v1553 = vpack.c.b16 %v1489, %v1488
      %v1554 = vpack.c.b16 %v1490, %v1490
      %1619 = vst [vmem:[#allocation8] sm:$0xff] %v1491
      %1620 = vst [vmem:[#allocation8 + $0x8] sm:$0xf] %v1492
      %1621 = vst [vmem:[#allocation8 + $0xc] sm:$0xff] %v1493
      %1622 = vst [vmem:[#allocation8 + $0x14] sm:$0xf] %v1494
      %1623 = vst [vmem:[#allocation8 + $0x18] sm:$0xff] %v1495
      %1624 = vst [vmem:[#allocation8 + $0x20] sm:$0xf] %v1496
      %1625 = vst [vmem:[#allocation8 + $0x24] sm:$0xff] %v1497
      %1626 = vst [vmem:[#allocation8 + $0x2c] sm:$0xf] %v1498
      %1627 = vst [vmem:[#allocation8 + $0x30] sm:$0xff] %v1499
      %1628 = vst [vmem:[#allocation8 + $0x38] sm:$0xf] %v1500
      %1629 = vst [vmem:[#allocation8 + $0x3c] sm:$0xff] %v1501
      %1630 = vst [vmem:[#allocation8 + $0x44] sm:$0xf] %v1502
      %1631 = vst [vmem:[#allocation8 + $0x48] sm:$0xff] %v1503
      %1632 = vst [vmem:[#allocation8 + $0x50] sm:$0xf] %v1504
      %1633 = vst [vmem:[#allocation8 + $0x54] sm:$0xff] %v1505
      %1634 = vst [vmem:[#allocation8 + $0x5c] sm:$0xf] %v1506
      %1635 = vst [vmem:[#allocation8 + $0x60] sm:$0xff] %v1507
      %1636 = vst [vmem:[#allocation8 + $0x68] sm:$0xf] %v1508
      %1637 = vst [vmem:[#allocation8 + $0x6c] sm:$0xff] %v1509
      %1638 = vst [vmem:[#allocation8 + $0x74] sm:$0xf] %v1510
      %1639 = vst [vmem:[#allocation8 + $0x78] sm:$0xff] %v1511
      %1640 = vst [vmem:[#allocation8 + $0x80] sm:$0xf] %v1512
      %1641 = vst [vmem:[#allocation8 + $0x84] sm:$0xff] %v1513
      %1642 = vst [vmem:[#allocation8 + $0x8c] sm:$0xf] %v1514
      %1643 = vst [vmem:[#allocation8 + $0x90] sm:$0xff] %v1515
      %1644 = vst [vmem:[#allocation8 + $0x98] sm:$0xf] %v1516
      %1645 = vst [vmem:[#allocation8 + $0x9c] sm:$0xff] %v1517
      %1646 = vst [vmem:[#allocation8 + $0xa4] sm:$0xf] %v1518
      %1647 = vst [vmem:[#allocation8 + $0xa8] sm:$0xff] %v1519
      %1648 = vst [vmem:[#allocation8 + $0xb0] sm:$0xf] %v1520
      %1649 = vst [vmem:[#allocation8 + $0xb4] sm:$0xff] %v1521
      %1650 = vst [vmem:[#allocation8 + $0xbc] sm:$0xf] %v1522
      %1651 = vst [vmem:[#allocation8 + $0xc0] sm:$0xff] %v1523
      %1652 = vst [vmem:[#allocation8 + $0xc8] sm:$0xf] %v1524
      %1653 = vst [vmem:[#allocation8 + $0xcc] sm:$0xff] %v1525
      %1654 = vst [vmem:[#allocation8 + $0xd4] sm:$0xf] %v1526
      %1655 = vst [vmem:[#allocation8 + $0xd8] sm:$0xff] %v1527
      %1656 = vst [vmem:[#allocation8 + $0xe0] sm:$0xf] %v1528
      %1657 = vst [vmem:[#allocation8 + $0xe4] sm:$0xff] %v1529
      %1658 = vst [vmem:[#allocation8 + $0xec] sm:$0xf] %v1530
      %1659 = vst [vmem:[#allocation8 + $0xf0] sm:$0xff] %v1531
      %1660 = vst [vmem:[#allocation8 + $0xf8] sm:$0xf] %v1532
      %1661 = vst [vmem:[#allocation8 + $0xfc] sm:$0xff] %v1533
      %1662 = vst [vmem:[#allocation8 + $0x104] sm:$0xf] %v1534
      %1663 = vst [vmem:[#allocation8 + $0x108] sm:$0xff] %v1535
      %1664 = vst [vmem:[#allocation8 + $0x110] sm:$0xf] %v1536
      %1665 = vst [vmem:[#allocation8 + $0x114] sm:$0xff] %v1537
      %1666 = vst [vmem:[#allocation8 + $0x11c] sm:$0xf] %v1538
      %1667 = vst [vmem:[#allocation8 + $0x120] sm:$0xff] %v1539
      %1668 = vst [vmem:[#allocation8 + $0x128] sm:$0xf] %v1540
      %1669 = vst [vmem:[#allocation8 + $0x12c] sm:$0xff] %v1541
      %1670 = vst [vmem:[#allocation8 + $0x134] sm:$0xf] %v1542
      %1671 = vst [vmem:[#allocation8 + $0x138] sm:$0xff] %v1543
      %1672 = vst [vmem:[#allocation8 + $0x140] sm:$0xf] %v1544
      %1673 = vst [vmem:[#allocation8 + $0x144] sm:$0xff] %v1545
      %1674 = vst [vmem:[#allocation8 + $0x14c] sm:$0xf] %v1546
      %1675 = vst [vmem:[#allocation8 + $0x150] sm:$0xff] %v1547
      %1676 = vst [vmem:[#allocation8 + $0x158] sm:$0xf] %v1548
      %1677 = vst [vmem:[#allocation8 + $0x15c] sm:$0xff] %v1549
      %1678 = vst [vmem:[#allocation8 + $0x164] sm:$0xf] %v1550
      %1679 = vst [vmem:[#allocation8 + $0x168] sm:$0xff] %v1551
      %1680 = vst [vmem:[#allocation8 + $0x170] sm:$0xf] %v1552
      %1681 = vst [vmem:[#allocation8 + $0x174] sm:$0xff] %v1553
      %1682 = vst [vmem:[#allocation8 + $0x17c] sm:$0xf] %v1554
    $region29: #{tpu_custom_call.1} parent=1 // pred_fallthru
      _
    // Predicated region
    $region30: #{tpu_custom_call.1} parent=1 // pred_check
      _
    $region31: #{tpu_custom_call.1} parent=1 // pred_check_branch
      %1684 = sbr.rel (0) target = $region33
    $region32: #{tpu_custom_call.1} parent=1 // pred_region
      %s1686 = ssub.s32 6144, 6144
      %1687 = vsyncadd [#allocation5], %s1686
      %s1688 = sshll.u32 [#allocation8], 4
      %s1689 = int_to_ptr.vmem [resolvable:$true] %s1688
      %1694 = dma.vmem_to_hbm [thread:$0]  %s1689, 6144, %s3, [#allocation5], 192, 192, 12
    $region33: #{tpu_custom_call.1} parent=1 // pred_fallthru
      _
    // Predicated region
    $region34: #{tpu_custom_call.1} parent=1 // pred_check
      _
    $region35: #{tpu_custom_call.1} parent=1 // pred_check_branch
      %1696 = sbr.rel (0) target = $region37
    $region36: #{tpu_custom_call.1} parent=1 // pred_region
      %1697 = dma.done [#allocation5], 6144
    $region37: #{tpu_custom_call.1} parent=1 // pred_fallthru
      _
    %1698 = vsyncpa [#allocation4], 1
    %1699 = vsyncpa [#allocation7], 1
    %1700 = vsyncpa [#allocation5], 1

</llo_original>
